<compile_context>
chip_gen: v7x
topology: tpu7x:2x2x1
jax: 0.10.0
libtpu: 0.0.40
codegen_flags: <defaults>
</compile_context>

<pallas_src>
import jax
import jax.numpy as jnp
from jax.experimental import pallas as pl
from jax.experimental.pallas import tpu as pltpu


def _lstm_portfolio_kernel(x_ref, w_ih_ref, w_hh_ref, b_ref,
                           w_lin_ref, b_lin_ref, out_ref, xg_ref):
    T, B, I = x_ref.shape                 # x is time-major (T, B, I)
    H = w_hh_ref.shape[0]

    # ---- Hoisted input projection for ALL timesteps (one MXU call), bias fused.
    # Off the serial chain; result parked in VMEM scratch so the recurrence
    # reads each timestep with a cheap leading-axis load.
    x_flat = x_ref[...].reshape(T * B, I)
    xg = (jnp.dot(x_flat, w_ih_ref[...], preferred_element_type=jnp.float32)
          + b_ref[...])                                   # (T*B, 4H)
    xg_ref[...] = xg.reshape(T, B, 4 * H)

    w_hh = w_hh_ref[...]                                  # (H, 4H)

    h = jnp.zeros((B, H), jnp.float32)
    c = jnp.zeros((B, H), jnp.float32)

    # ---- Static unroll over time (T known at trace time).  Only h @ W_hh and
    # the gate nonlinearities remain on the serial dependency chain.
    for t in range(T):
        gates = xg_ref[t] + jnp.dot(h, w_hh, preferred_element_type=jnp.float32)
        sig = jax.nn.sigmoid(gates[:, :3 * H])            # [i, f, o] contiguous
        i_g = sig[:, 0 * H:1 * H]
        f_g = sig[:, 1 * H:2 * H]
        o_g = sig[:, 2 * H:3 * H]
        g_g = jnp.tanh(gates[:, 3 * H:])                  # cell candidate
        c = f_g * c + i_g * g_g
        h = o_g * jnp.tanh(c)

    # ---- Linear(h_T) + Softmax over dim=1 (reciprocal+mul epilogue).
    logits = (jnp.dot(h, w_lin_ref[...], preferred_element_type=jnp.float32)
              + b_lin_ref[...])                           # (B, O)
    m = jnp.max(logits, axis=1, keepdims=True)
    e = jnp.exp(logits - m)
    s = jnp.sum(e, axis=1, keepdims=True)
    out_ref[...] = e * pl.reciprocal(s, approx=False)


def portfolio_forward(x, params):
    """x: (B, T, I) float32 -> softmax portfolio weights (B, O)."""
    B, T, I = x.shape
    H = params["w_hh_t"].shape[0]
    O = params["w_lin_t"].shape[1]

    # Time-major layout for the kernel; a tiny (B*T*I*4 bytes) transpose done
    # once outside the kernel.
    x_tm = jnp.transpose(x, (1, 0, 2))                    # (T, B, I)

    vmem_full = lambda: pl.BlockSpec(memory_space=pltpu.MemorySpace.VMEM)
    # Grid-less call: runs on a single TensorCore.  At B=2 that is the right
    # choice on every generation; for large B, add a 1-D "parallel" grid over
    # batch blocks to use both v7x TCs.
    return pl.pallas_call(
        _lstm_portfolio_kernel,
        out_shape=jax.ShapeDtypeStruct((B, O), jnp.float32),
        in_specs=[vmem_full() for _ in range(6)],         # whole arrays VMEM-resident
        out_specs=vmem_full(),
        scratch_shapes=[pltpu.VMEM((T, B, 4 * H), jnp.float32)],
    )(x_tm, params["w_ih_t"], params["w_hh_t"], params["b"],
      params["w_lin_t"], params["b_lin"])


def init_torch_params(key, input_size=8, hidden_size=64, output_size=4):
    """PyTorch-layout parameters with U(-1/sqrt(H), 1/sqrt(H)) init, gate order [i,f,g,o]."""
    ks = jax.random.split(key, 6)
    bound = 1.0 / jnp.sqrt(hidden_size)
    u = lambda k, shape: jax.random.uniform(k, shape, jnp.float32, -bound, bound)
    return {
        "w_ih": u(ks[0], (4 * hidden_size, input_size)),    # weight_ih_l0
        "w_hh": u(ks[1], (4 * hidden_size, hidden_size)),   # weight_hh_l0
        "b_ih": u(ks[2], (4 * hidden_size,)),
        "b_hh": u(ks[3], (4 * hidden_size,)),
        "w_lin": u(ks[4], (output_size, hidden_size)),      # nn.Linear weight
        "b_lin": u(ks[5], (output_size,)),
    }


def prepare_params(tp, hidden_size):
    """Kernel layout: pre-transposed weights, fused bias, gate blocks reordered
    from PyTorch [i, f, g, o] to [i, f, o, g] (sigmoid gates contiguous)."""
    H = hidden_size
    perm = jnp.concatenate([
        jnp.arange(0 * H, 1 * H),      # i
        jnp.arange(1 * H, 2 * H),      # f
        jnp.arange(3 * H, 4 * H),      # o
        jnp.arange(2 * H, 3 * H),      # g
    ])
    return {
        "w_ih_t": tp["w_ih"][perm].T,                    # (I, 4H)
        "w_hh_t": tp["w_hh"][perm].T,                    # (H, 4H)
        "b": (tp["b_ih"] + tp["b_hh"])[perm][None, :],   # (1, 4H)
        "w_lin_t": tp["w_lin"].T,                        # (H, O)
        "b_lin": tp["b_lin"][None, :],                   # (1, O)
    }


def reference_forward(x, tp, hidden_size):
    """Pure-JAX reference using the raw PyTorch-layout params (standard [i,f,g,o])."""
    H = hidden_size
    B = x.shape[0]
    w_ih_t = tp["w_ih"].T
    w_hh_t = tp["w_hh"].T
    b = (tp["b_ih"] + tp["b_hh"])[None, :]

    def step(carry, x_t):
        h, c = carry
        gates = x_t @ w_ih_t + h @ w_hh_t + b
        i_g = jax.nn.sigmoid(gates[:, 0 * H:1 * H])
        f_g = jax.nn.sigmoid(gates[:, 1 * H:2 * H])
        g_g = jnp.tanh(gates[:, 2 * H:3 * H])
        o_g = jax.nn.sigmoid(gates[:, 3 * H:4 * H])
        c = f_g * c + i_g * g_g
        h = o_g * jnp.tanh(c)
        return (h, c), None

    h0 = jnp.zeros((B, H), jnp.float32)
    c0 = jnp.zeros((B, H), jnp.float32)
    (h_T, _), _ = jax.lax.scan(step, (h0, c0), jnp.transpose(x, (1, 0, 2)))
    logits = h_T @ tp["w_lin"].T + tp["b_lin"][None, :]
    return jax.nn.softmax(logits, axis=1)


if __name__ == "__main__":
    B, T, I, H, O = 2, 8, 8, 64, 4
    key = jax.random.PRNGKey(0)
    k_x, k_p = jax.random.split(key)
    x = jax.random.normal(k_x, (B, T, I), jnp.float32)

    torch_params = init_torch_params(k_p, input_size=I, hidden_size=H, output_size=O)
    params = prepare_params(torch_params, hidden_size=H)

    out = portfolio_forward(x, params)
    out = jax.block_until_ready(out)

    ref = reference_forward(x, torch_params, hidden_size=H)
    assert out.shape == (B, O)
    assert jnp.allclose(jnp.sum(out, axis=1), 1.0, atol=1e-5)
    assert jnp.allclose(out, ref, atol=1e-5, rtol=1e-4), (out, ref)
    print("KERNEL_OK")
</pallas_src>

<mosaic_0001>
module attributes {stable_mosaic.version = 11 : i64} {
  func.func @_lstm_portfolio_kernel(%arg0: memref<8x2x8xf32, #tpu.memory_space<vmem>>, %arg1: memref<8x256xf32, #tpu.memory_space<vmem>>, %arg2: memref<64x256xf32, #tpu.memory_space<vmem>>, %arg3: memref<1x256xf32, #tpu.memory_space<vmem>>, %arg4: memref<64x4xf32, #tpu.memory_space<vmem>>, %arg5: memref<1x4xf32, #tpu.memory_space<vmem>>, %arg6: memref<2x4xf32, #tpu.memory_space<vmem>>, %arg7: memref<8x2x256xf32, #tpu.memory_space<vmem>>) attributes {dimension_semantics = [], scalar_prefetch = 0 : i64, scratch_operands = 1 : i64, tpu.core_type = #tpu.core_type<tc>} {
    %c0 = arith.constant 0 : index
    %c0_0 = arith.constant 0 : index
    %c0_1 = arith.constant 0 : index
    %0 = vector.load %arg0[%c0, %c0_0, %c0_1] : memref<8x2x8xf32, #tpu.memory_space<vmem>>, vector<8x2x8xf32>
    %1 = vector.shape_cast %0 : vector<8x2x8xf32> to vector<16x8xf32>
    %c0_2 = arith.constant 0 : index
    %c0_3 = arith.constant 0 : index
    %2 = vector.load %arg1[%c0_2, %c0_3] : memref<8x256xf32, #tpu.memory_space<vmem>>, vector<8x256xf32>
    %cst = arith.constant dense<0.000000e+00> : vector<16x256xf32>
    %3 = tpu.matmul %1, %2, %cst {dimension_numbers = #tpu.dot_dimension_numbers<[1], [0], [0], [1], [0, 0, 1, 1], [], []>} : vector<16x8xf32>, vector<8x256xf32>, vector<16x256xf32> -> vector<16x256xf32>
    %c0_4 = arith.constant 0 : index
    %c0_5 = arith.constant 0 : index
    %4 = vector.load %arg3[%c0_4, %c0_5] : memref<1x256xf32, #tpu.memory_space<vmem>>, vector<1x256xf32>
    %5 = vector.broadcast %4 : vector<1x256xf32> to vector<16x256xf32>
    %6 = arith.addf %3, %5 : vector<16x256xf32>
    %7 = vector.shape_cast %6 : vector<16x256xf32> to vector<8x2x256xf32>
    %c0_6 = arith.constant 0 : index
    %c0_7 = arith.constant 0 : index
    %c0_8 = arith.constant 0 : index
    %8 = vector.load %arg7[%c0_6, %c0_7, %c0_8] : memref<8x2x256xf32, #tpu.memory_space<vmem>>, vector<8x2x256xf32>
    tpu.vector_store %arg7[%c0_6, %c0_7, %c0_8], %7 {strides = array<i32>} : memref<8x2x256xf32, #tpu.memory_space<vmem>>, vector<8x2x256xf32>,
    %c0_9 = arith.constant 0 : index
    %c0_10 = arith.constant 0 : index
    %9 = vector.load %arg2[%c0_9, %c0_10] : memref<64x256xf32, #tpu.memory_space<vmem>>, vector<64x256xf32>
    %cst_11 = arith.constant 0.000000e+00 : f32
    %10 = vector.broadcast %cst_11 : f32 to vector<2x64xf32>
    %cst_12 = arith.constant 0.000000e+00 : f32
    %11 = vector.broadcast %cst_12 : f32 to vector<2x64xf32>
    %c0_13 = arith.constant 0 : index
    %c0_14 = arith.constant 0 : index
    %c0_15 = arith.constant 0 : index
    %12 = vector.load %arg7[%c0_13, %c0_14, %c0_15] : memref<8x2x256xf32, #tpu.memory_space<vmem>>, vector<1x2x256xf32>
    %13 = vector.shape_cast %12 : vector<1x2x256xf32> to vector<2x256xf32>
    %cst_16 = arith.constant dense<0.000000e+00> : vector<2x256xf32>
    %14 = tpu.matmul %10, %9, %cst_16 {dimension_numbers = #tpu.dot_dimension_numbers<[1], [0], [0], [1], [0, 0, 1, 1], [], []>} : vector<2x64xf32>, vector<64x256xf32>, vector<2x256xf32> -> vector<2x256xf32>
    %15 = arith.addf %13, %14 : vector<2x256xf32>
    %16 = vector.extract_strided_slice %15 {offsets = [0, 0], sizes = [2, 192], strides = [1, 1]} : vector<2x256xf32> to vector<2x192xf32>
    %17 = arith.negf %16 : vector<2x192xf32>
    %18 = math.exp %17 : vector<2x192xf32>
    %cst_17 = arith.constant 1.000000e+00 : f32
    %19 = vector.broadcast %cst_17 : f32 to vector<2x192xf32>
    %20 = arith.addf %19, %18 : vector<2x192xf32>
    %21 = arith.divf %19, %20 : vector<2x192xf32>
    %22 = vector.extract_strided_slice %21 {offsets = [0, 0], sizes = [2, 64], strides = [1, 1]} : vector<2x192xf32> to vector<2x64xf32>
    %23 = vector.extract_strided_slice %21 {offsets = [0, 64], sizes = [2, 64], strides = [1, 1]} : vector<2x192xf32> to vector<2x64xf32>
    %24 = vector.extract_strided_slice %21 {offsets = [0, 128], sizes = [2, 64], strides = [1, 1]} : vector<2x192xf32> to vector<2x64xf32>
    %25 = vector.extract_strided_slice %15 {offsets = [0, 192], sizes = [2, 64], strides = [1, 1]} : vector<2x256xf32> to vector<2x64xf32>
    %26 = math.tanh %25 : vector<2x64xf32>
    %27 = arith.mulf %23, %11 : vector<2x64xf32>
    %28 = arith.mulf %22, %26 : vector<2x64xf32>
    %29 = arith.addf %27, %28 : vector<2x64xf32>
    %30 = math.tanh %29 : vector<2x64xf32>
    %31 = arith.mulf %24, %30 : vector<2x64xf32>
    %c1 = arith.constant 1 : index
    %c0_18 = arith.constant 0 : index
    %c0_19 = arith.constant 0 : index
    %32 = vector.load %arg7[%c1, %c0_18, %c0_19] : memref<8x2x256xf32, #tpu.memory_space<vmem>>, vector<1x2x256xf32>
    %33 = vector.shape_cast %32 : vector<1x2x256xf32> to vector<2x256xf32>
    %cst_20 = arith.constant dense<0.000000e+00> : vector<2x256xf32>
    %34 = tpu.matmul %31, %9, %cst_20 {dimension_numbers = #tpu.dot_dimension_numbers<[1], [0], [0], [1], [0, 0, 1, 1], [], []>} : vector<2x64xf32>, vector<64x256xf32>, vector<2x256xf32> -> vector<2x256xf32>
    %35 = arith.addf %33, %34 : vector<2x256xf32>
    %36 = vector.extract_strided_slice %35 {offsets = [0, 0], sizes = [2, 192], strides = [1, 1]} : vector<2x256xf32> to vector<2x192xf32>
    %37 = arith.negf %36 : vector<2x192xf32>
    %38 = math.exp %37 : vector<2x192xf32>
    %cst_21 = arith.constant 1.000000e+00 : f32
    %39 = vector.broadcast %cst_21 : f32 to vector<2x192xf32>
    %40 = arith.addf %39, %38 : vector<2x192xf32>
    %41 = arith.divf %39, %40 : vector<2x192xf32>
    %42 = vector.extract_strided_slice %41 {offsets = [0, 0], sizes = [2, 64], strides = [1, 1]} : vector<2x192xf32> to vector<2x64xf32>
    %43 = vector.extract_strided_slice %41 {offsets = [0, 64], sizes = [2, 64], strides = [1, 1]} : vector<2x192xf32> to vector<2x64xf32>
    %44 = vector.extract_strided_slice %41 {offsets = [0, 128], sizes = [2, 64], strides = [1, 1]} : vector<2x192xf32> to vector<2x64xf32>
    %45 = vector.extract_strided_slice %35 {offsets = [0, 192], sizes = [2, 64], strides = [1, 1]} : vector<2x256xf32> to vector<2x64xf32>
    %46 = math.tanh %45 : vector<2x64xf32>
    %47 = arith.mulf %43, %29 : vector<2x64xf32>
    %48 = arith.mulf %42, %46 : vector<2x64xf32>
    %49 = arith.addf %47, %48 : vector<2x64xf32>
    %50 = math.tanh %49 : vector<2x64xf32>
    %51 = arith.mulf %44, %50 : vector<2x64xf32>
    %c2 = arith.constant 2 : index
    %c0_22 = arith.constant 0 : index
    %c0_23 = arith.constant 0 : index
    %52 = vector.load %arg7[%c2, %c0_22, %c0_23] : memref<8x2x256xf32, #tpu.memory_space<vmem>>, vector<1x2x256xf32>
    %53 = vector.shape_cast %52 : vector<1x2x256xf32> to vector<2x256xf32>
    %cst_24 = arith.constant dense<0.000000e+00> : vector<2x256xf32>
    %54 = tpu.matmul %51, %9, %cst_24 {dimension_numbers = #tpu.dot_dimension_numbers<[1], [0], [0], [1], [0, 0, 1, 1], [], []>} : vector<2x64xf32>, vector<64x256xf32>, vector<2x256xf32> -> vector<2x256xf32>
    %55 = arith.addf %53, %54 : vector<2x256xf32>
    %56 = vector.extract_strided_slice %55 {offsets = [0, 0], sizes = [2, 192], strides = [1, 1]} : vector<2x256xf32> to vector<2x192xf32>
    %57 = arith.negf %56 : vector<2x192xf32>
    %58 = math.exp %57 : vector<2x192xf32>
    %cst_25 = arith.constant 1.000000e+00 : f32
    %59 = vector.broadcast %cst_25 : f32 to vector<2x192xf32>
    %60 = arith.addf %59, %58 : vector<2x192xf32>
    %61 = arith.divf %59, %60 : vector<2x192xf32>
    %62 = vector.extract_strided_slice %61 {offsets = [0, 0], sizes = [2, 64], strides = [1, 1]} : vector<2x192xf32> to vector<2x64xf32>
    %63 = vector.extract_strided_slice %61 {offsets = [0, 64], sizes = [2, 64], strides = [1, 1]} : vector<2x192xf32> to vector<2x64xf32>
    %64 = vector.extract_strided_slice %61 {offsets = [0, 128], sizes = [2, 64], strides = [1, 1]} : vector<2x192xf32> to vector<2x64xf32>
    %65 = vector.extract_strided_slice %55 {offsets = [0, 192], sizes = [2, 64], strides = [1, 1]} : vector<2x256xf32> to vector<2x64xf32>
    %66 = math.tanh %65 : vector<2x64xf32>
    %67 = arith.mulf %63, %49 : vector<2x64xf32>
    %68 = arith.mulf %62, %66 : vector<2x64xf32>
    %69 = arith.addf %67, %68 : vector<2x64xf32>
    %70 = math.tanh %69 : vector<2x64xf32>
    %71 = arith.mulf %64, %70 : vector<2x64xf32>
    %c3 = arith.constant 3 : index
    %c0_26 = arith.constant 0 : index
    %c0_27 = arith.constant 0 : index
    %72 = vector.load %arg7[%c3, %c0_26, %c0_27] : memref<8x2x256xf32, #tpu.memory_space<vmem>>, vector<1x2x256xf32>
    %73 = vector.shape_cast %72 : vector<1x2x256xf32> to vector<2x256xf32>
    %cst_28 = arith.constant dense<0.000000e+00> : vector<2x256xf32>
    %74 = tpu.matmul %71, %9, %cst_28 {dimension_numbers = #tpu.dot_dimension_numbers<[1], [0], [0], [1], [0, 0, 1, 1], [], []>} : vector<2x64xf32>, vector<64x256xf32>, vector<2x256xf32> -> vector<2x256xf32>
    %75 = arith.addf %73, %74 : vector<2x256xf32>
    %76 = vector.extract_strided_slice %75 {offsets = [0, 0], sizes = [2, 192], strides = [1, 1]} : vector<2x256xf32> to vector<2x192xf32>
    %77 = arith.negf %76 : vector<2x192xf32>
    %78 = math.exp %77 : vector<2x192xf32>
    %cst_29 = arith.constant 1.000000e+00 : f32
    %79 = vector.broadcast %cst_29 : f32 to vector<2x192xf32>
    %80 = arith.addf %79, %78 : vector<2x192xf32>
    %81 = arith.divf %79, %80 : vector<2x192xf32>
    %82 = vector.extract_strided_slice %81 {offsets = [0, 0], sizes = [2, 64], strides = [1, 1]} : vector<2x192xf32> to vector<2x64xf32>
    %83 = vector.extract_strided_slice %81 {offsets = [0, 64], sizes = [2, 64], strides = [1, 1]} : vector<2x192xf32> to vector<2x64xf32>
    %84 = vector.extract_strided_slice %81 {offsets = [0, 128], sizes = [2, 64], strides = [1, 1]} : vector<2x192xf32> to vector<2x64xf32>
    %85 = vector.extract_strided_slice %75 {offsets = [0, 192], sizes = [2, 64], strides = [1, 1]} : vector<2x256xf32> to vector<2x64xf32>
    %86 = math.tanh %85 : vector<2x64xf32>
    %87 = arith.mulf %83, %69 : vector<2x64xf32>
    %88 = arith.mulf %82, %86 : vector<2x64xf32>
    %89 = arith.addf %87, %88 : vector<2x64xf32>
    %90 = math.tanh %89 : vector<2x64xf32>
    %91 = arith.mulf %84, %90 : vector<2x64xf32>
    %c4 = arith.constant 4 : index
    %c0_30 = arith.constant 0 : index
    %c0_31 = arith.constant 0 : index
    %92 = vector.load %arg7[%c4, %c0_30, %c0_31] : memref<8x2x256xf32, #tpu.memory_space<vmem>>, vector<1x2x256xf32>
    %93 = vector.shape_cast %92 : vector<1x2x256xf32> to vector<2x256xf32>
    %cst_32 = arith.constant dense<0.000000e+00> : vector<2x256xf32>
    %94 = tpu.matmul %91, %9, %cst_32 {dimension_numbers = #tpu.dot_dimension_numbers<[1], [0], [0], [1], [0, 0, 1, 1], [], []>} : vector<2x64xf32>, vector<64x256xf32>, vector<2x256xf32> -> vector<2x256xf32>
    %95 = arith.addf %93, %94 : vector<2x256xf32>
    %96 = vector.extract_strided_slice %95 {offsets = [0, 0], sizes = [2, 192], strides = [1, 1]} : vector<2x256xf32> to vector<2x192xf32>
    %97 = arith.negf %96 : vector<2x192xf32>
    %98 = math.exp %97 : vector<2x192xf32>
    %cst_33 = arith.constant 1.000000e+00 : f32
    %99 = vector.broadcast %cst_33 : f32 to vector<2x192xf32>
    %100 = arith.addf %99, %98 : vector<2x192xf32>
    %101 = arith.divf %99, %100 : vector<2x192xf32>
    %102 = vector.extract_strided_slice %101 {offsets = [0, 0], sizes = [2, 64], strides = [1, 1]} : vector<2x192xf32> to vector<2x64xf32>
    %103 = vector.extract_strided_slice %101 {offsets = [0, 64], sizes = [2, 64], strides = [1, 1]} : vector<2x192xf32> to vector<2x64xf32>
    %104 = vector.extract_strided_slice %101 {offsets = [0, 128], sizes = [2, 64], strides = [1, 1]} : vector<2x192xf32> to vector<2x64xf32>
    %105 = vector.extract_strided_slice %95 {offsets = [0, 192], sizes = [2, 64], strides = [1, 1]} : vector<2x256xf32> to vector<2x64xf32>
    %106 = math.tanh %105 : vector<2x64xf32>
    %107 = arith.mulf %103, %89 : vector<2x64xf32>
    %108 = arith.mulf %102, %106 : vector<2x64xf32>
    %109 = arith.addf %107, %108 : vector<2x64xf32>
    %110 = math.tanh %109 : vector<2x64xf32>
    %111 = arith.mulf %104, %110 : vector<2x64xf32>
    %c5 = arith.constant 5 : index
    %c0_34 = arith.constant 0 : index
    %c0_35 = arith.constant 0 : index
    %112 = vector.load %arg7[%c5, %c0_34, %c0_35] : memref<8x2x256xf32, #tpu.memory_space<vmem>>, vector<1x2x256xf32>
    %113 = vector.shape_cast %112 : vector<1x2x256xf32> to vector<2x256xf32>
    %cst_36 = arith.constant dense<0.000000e+00> : vector<2x256xf32>
    %114 = tpu.matmul %111, %9, %cst_36 {dimension_numbers = #tpu.dot_dimension_numbers<[1], [0], [0], [1], [0, 0, 1, 1], [], []>} : vector<2x64xf32>, vector<64x256xf32>, vector<2x256xf32> -> vector<2x256xf32>
    %115 = arith.addf %113, %114 : vector<2x256xf32>
    %116 = vector.extract_strided_slice %115 {offsets = [0, 0], sizes = [2, 192], strides = [1, 1]} : vector<2x256xf32> to vector<2x192xf32>
    %117 = arith.negf %116 : vector<2x192xf32>
    %118 = math.exp %117 : vector<2x192xf32>
    %cst_37 = arith.constant 1.000000e+00 : f32
    %119 = vector.broadcast %cst_37 : f32 to vector<2x192xf32>
    %120 = arith.addf %119, %118 : vector<2x192xf32>
    %121 = arith.divf %119, %120 : vector<2x192xf32>
    %122 = vector.extract_strided_slice %121 {offsets = [0, 0], sizes = [2, 64], strides = [1, 1]} : vector<2x192xf32> to vector<2x64xf32>
    %123 = vector.extract_strided_slice %121 {offsets = [0, 64], sizes = [2, 64], strides = [1, 1]} : vector<2x192xf32> to vector<2x64xf32>
    %124 = vector.extract_strided_slice %121 {offsets = [0, 128], sizes = [2, 64], strides = [1, 1]} : vector<2x192xf32> to vector<2x64xf32>
    %125 = vector.extract_strided_slice %115 {offsets = [0, 192], sizes = [2, 64], strides = [1, 1]} : vector<2x256xf32> to vector<2x64xf32>
    %126 = math.tanh %125 : vector<2x64xf32>
    %127 = arith.mulf %123, %109 : vector<2x64xf32>
    %128 = arith.mulf %122, %126 : vector<2x64xf32>
    %129 = arith.addf %127, %128 : vector<2x64xf32>
    %130 = math.tanh %129 : vector<2x64xf32>
    %131 = arith.mulf %124, %130 : vector<2x64xf32>
    %c6 = arith.constant 6 : index
    %c0_38 = arith.constant 0 : index
    %c0_39 = arith.constant 0 : index
    %132 = vector.load %arg7[%c6, %c0_38, %c0_39] : memref<8x2x256xf32, #tpu.memory_space<vmem>>, vector<1x2x256xf32>
    %133 = vector.shape_cast %132 : vector<1x2x256xf32> to vector<2x256xf32>
    %cst_40 = arith.constant dense<0.000000e+00> : vector<2x256xf32>
    %134 = tpu.matmul %131, %9, %cst_40 {dimension_numbers = #tpu.dot_dimension_numbers<[1], [0], [0], [1], [0, 0, 1, 1], [], []>} : vector<2x64xf32>, vector<64x256xf32>, vector<2x256xf32> -> vector<2x256xf32>
    %135 = arith.addf %133, %134 : vector<2x256xf32>
    %136 = vector.extract_strided_slice %135 {offsets = [0, 0], sizes = [2, 192], strides = [1, 1]} : vector<2x256xf32> to vector<2x192xf32>
    %137 = arith.negf %136 : vector<2x192xf32>
    %138 = math.exp %137 : vector<2x192xf32>
    %cst_41 = arith.constant 1.000000e+00 : f32
    %139 = vector.broadcast %cst_41 : f32 to vector<2x192xf32>
    %140 = arith.addf %139, %138 : vector<2x192xf32>
    %141 = arith.divf %139, %140 : vector<2x192xf32>
    %142 = vector.extract_strided_slice %141 {offsets = [0, 0], sizes = [2, 64], strides = [1, 1]} : vector<2x192xf32> to vector<2x64xf32>
    %143 = vector.extract_strided_slice %141 {offsets = [0, 64], sizes = [2, 64], strides = [1, 1]} : vector<2x192xf32> to vector<2x64xf32>
    %144 = vector.extract_strided_slice %141 {offsets = [0, 128], sizes = [2, 64], strides = [1, 1]} : vector<2x192xf32> to vector<2x64xf32>
    %145 = vector.extract_strided_slice %135 {offsets = [0, 192], sizes = [2, 64], strides = [1, 1]} : vector<2x256xf32> to vector<2x64xf32>
    %146 = math.tanh %145 : vector<2x64xf32>
    %147 = arith.mulf %143, %129 : vector<2x64xf32>
    %148 = arith.mulf %142, %146 : vector<2x64xf32>
    %149 = arith.addf %147, %148 : vector<2x64xf32>
    %150 = math.tanh %149 : vector<2x64xf32>
    %151 = arith.mulf %144, %150 : vector<2x64xf32>
    %c7 = arith.constant 7 : index
    %c0_42 = arith.constant 0 : index
    %c0_43 = arith.constant 0 : index
    %152 = vector.load %arg7[%c7, %c0_42, %c0_43] : memref<8x2x256xf32, #tpu.memory_space<vmem>>, vector<1x2x256xf32>
    %153 = vector.shape_cast %152 : vector<1x2x256xf32> to vector<2x256xf32>
    %cst_44 = arith.constant dense<0.000000e+00> : vector<2x256xf32>
    %154 = tpu.matmul %151, %9, %cst_44 {dimension_numbers = #tpu.dot_dimension_numbers<[1], [0], [0], [1], [0, 0, 1, 1], [], []>} : vector<2x64xf32>, vector<64x256xf32>, vector<2x256xf32> -> vector<2x256xf32>
    %155 = arith.addf %153, %154 : vector<2x256xf32>
    %156 = vector.extract_strided_slice %155 {offsets = [0, 0], sizes = [2, 192], strides = [1, 1]} : vector<2x256xf32> to vector<2x192xf32>
    %157 = arith.negf %156 : vector<2x192xf32>
    %158 = math.exp %157 : vector<2x192xf32>
    %cst_45 = arith.constant 1.000000e+00 : f32
    %159 = vector.broadcast %cst_45 : f32 to vector<2x192xf32>
    %160 = arith.addf %159, %158 : vector<2x192xf32>
    %161 = arith.divf %159, %160 : vector<2x192xf32>
    %162 = vector.extract_strided_slice %161 {offsets = [0, 0], sizes = [2, 64], strides = [1, 1]} : vector<2x192xf32> to vector<2x64xf32>
    %163 = vector.extract_strided_slice %161 {offsets = [0, 64], sizes = [2, 64], strides = [1, 1]} : vector<2x192xf32> to vector<2x64xf32>
    %164 = vector.extract_strided_slice %161 {offsets = [0, 128], sizes = [2, 64], strides = [1, 1]} : vector<2x192xf32> to vector<2x64xf32>
    %165 = vector.extract_strided_slice %155 {offsets = [0, 192], sizes = [2, 64], strides = [1, 1]} : vector<2x256xf32> to vector<2x64xf32>
    %166 = math.tanh %165 : vector<2x64xf32>
    %167 = arith.mulf %163, %149 : vector<2x64xf32>
    %168 = arith.mulf %162, %166 : vector<2x64xf32>
    %169 = arith.addf %167, %168 : vector<2x64xf32>
    %170 = math.tanh %169 : vector<2x64xf32>
    %171 = arith.mulf %164, %170 : vector<2x64xf32>
    %c0_46 = arith.constant 0 : index
    %c0_47 = arith.constant 0 : index
    %172 = vector.load %arg4[%c0_46, %c0_47] : memref<64x4xf32, #tpu.memory_space<vmem>>, vector<64x4xf32>
    %cst_48 = arith.constant dense<0.000000e+00> : vector<2x4xf32>
    %173 = tpu.matmul %171, %172, %cst_48 {dimension_numbers = #tpu.dot_dimension_numbers<[1], [0], [0], [1], [0, 0, 1, 1], [], []>} : vector<2x64xf32>, vector<64x4xf32>, vector<2x4xf32> -> vector<2x4xf32>
    %c0_49 = arith.constant 0 : index
    %c0_50 = arith.constant 0 : index
    %174 = vector.load %arg5[%c0_49, %c0_50] : memref<1x4xf32, #tpu.memory_space<vmem>>, vector<1x4xf32>
    %175 = vector.broadcast %174 : vector<1x4xf32> to vector<2x4xf32>
    %176 = arith.addf %173, %175 : vector<2x4xf32>
    %cst_51 = arith.constant dense<0xFF800000> : vector<2xf32>
    %177 = vector.multi_reduction <maximumf>, %176, %cst_51 [1] : vector<2x4xf32> to vector<2xf32>
    %178 = vector.shape_cast %177 : vector<2xf32> to vector<2x1xf32>
    %179 = vector.broadcast %178 : vector<2x1xf32> to vector<2x4xf32>
    %180 = arith.subf %176, %179 : vector<2x4xf32>
    %181 = math.exp %180 : vector<2x4xf32>
    %cst_52 = arith.constant dense<0.000000e+00> : vector<2xf32>
    %182 = vector.multi_reduction <add>, %181, %cst_52 [1] : vector<2x4xf32> to vector<2xf32>
    %183 = vector.shape_cast %182 : vector<2xf32> to vector<2x1xf32>
    %184 = tpu.reciprocal %183 : vector<2x1xf32> -> vector<2x1xf32>
    %185 = vector.broadcast %184 : vector<2x1xf32> to vector<2x4xf32>
    %186 = arith.mulf %181, %185 : vector<2x4xf32>
    %c0_53 = arith.constant 0 : index
    %c0_54 = arith.constant 0 : index
    %187 = vector.load %arg6[%c0_53, %c0_54] : memref<2x4xf32, #tpu.memory_space<vmem>>, vector<2x4xf32>
    tpu.vector_store %arg6[%c0_53, %c0_54], %186 {strides = array<i32>} : memref<2x4xf32, #tpu.memory_space<vmem>>, vector<2x4xf32>,
    return
  }
}

</mosaic_0001>

<llo_original>
// kernel: tpu_custom_call.1
$region0: #{tpu_custom_call.1}
  #allocation0 [shape = 'u32[]', space=smem, size = 0x4, offset = 0x4, fixed_abs, tag = 'smem constant byte address 0x4 - core index']
  #allocation1 [shape = 'u32[144,128]{1,0:T(1,128)}', space=vmem, size = 0x12000, scoped, tag = 'internal scratch']
  #allocation2 [shape = 'f32[8,2,256]{2,1,0:T(2,128)}', space=vmem, size = 0x4000, scoped, tag = 'scratch operand']
  %s0 = inlined_call_operand.vmem [shape: f32[8,2,8], index: 0, kind: input, shape index: {}]
  %s1 = inlined_call_operand.vmem [shape: f32[8,256], index: 1, kind: input, shape index: {}]
  %s2 = inlined_call_operand.hbm [shape: f32[64,256], index: 2, kind: input, shape index: {}]
  %s3 = inlined_call_operand.vmem [shape: f32[1,256], index: 3, kind: input, shape index: {}]
  %s4 = inlined_call_operand.vmem [shape: f32[64,4], index: 4, kind: input, shape index: {}]
  %s5 = inlined_call_operand.vmem [shape: f32[1,4], index: 5, kind: input, shape index: {}]
  %s6 = inlined_call_operand.hbm [shape: f32[2,4], index: 6, kind: output, shape index: {}]
  %s7 = sld [smem:[#allocation0]]
  $region38: #{tpu_custom_call.1} parent=0
    _
  %s9 = ssub.s32 1, %s7
  %s10 = scalar_select 0, %s9, %s7
  $region1: #{tpu_custom_call.1} parent=0
    #allocation3 [shape = 'u8[65536]{0}', space=vmem, size = 0x10000, scoped, tag = 'input window, operand 2, single buffered']
    #allocation4 [shape = 's32[1]{0}', space=sflag, size = 0x4, scoped, tag = 'scoped memory for tpu_custom_call.1']
    #allocation5 [shape = 's32[1]{0}', space=sflag, size = 0x4, scoped, tag = 'scoped memory for tpu_custom_call.1']
    #allocation6 [shape = 'u8[1024]{0}', space=vmem, size = 0x400, scoped, tag = 'output window, operand 0, single buffered']
    %11 = vsyncpa [#allocation4], 0
    %12 = vsyncpa [#allocation5], 0
    // Predicated region
    $region2: #{tpu_custom_call.1} parent=1 // pred_check
      _
    $region3: #{tpu_custom_call.1} parent=1 // pred_check_branch
      %14 = sbr.rel (0) target = $region5
    $region4: #{tpu_custom_call.1} parent=1 // pred_region
      _
    $region5: #{tpu_custom_call.1} parent=1 // pred_fallthru
      _
    // Predicated region
    $region6: #{tpu_custom_call.1} parent=1 // pred_check
      _
    $region7: #{tpu_custom_call.1} parent=1 // pred_check_branch
      %16 = sbr.rel (0) target = $region9
    $region8: #{tpu_custom_call.1} parent=1 // pred_region
      _
    $region9: #{tpu_custom_call.1} parent=1 // pred_fallthru
      _
    // Predicated region
    $region10: #{tpu_custom_call.1} parent=1 // pred_check
      _
    $region11: #{tpu_custom_call.1} parent=1 // pred_check_branch
      %18 = sbr.rel (0) target = $region13
    $region12: #{tpu_custom_call.1} parent=1 // pred_region
      %s20 = ssub.s32 2048, 2048
      %21 = vsyncadd [#allocation4], %s20
      %s22 = sshll.u32 [#allocation3], 4
      %s23 = int_to_ptr.vmem [resolvable:$true] %s22
      %28 = dma.hbm_to_vmem [thread:$0]  %s2, 2048, %s23, [#allocation4], 256, 256, 16
    $region13: #{tpu_custom_call.1} parent=1 // pred_fallthru
      _
    // Predicated region
    $region14: #{tpu_custom_call.1} parent=1 // pred_check
      _
    $region15: #{tpu_custom_call.1} parent=1 // pred_check_branch
      %30 = sbr.rel (0) target = $region17
    $region16: #{tpu_custom_call.1} parent=1 // pred_region
      _
    $region17: #{tpu_custom_call.1} parent=1 // pred_fallthru
      _
    // Predicated region
    $region18: #{tpu_custom_call.1} parent=1 // pred_check
      _
    $region19: #{tpu_custom_call.1} parent=1 // pred_check_branch
      %32 = sbr.rel (0) target = $region21
    $region20: #{tpu_custom_call.1} parent=1 // pred_region
      _
    $region21: #{tpu_custom_call.1} parent=1 // pred_fallthru
      _
    // Predicated region
    $region22: #{tpu_custom_call.1} parent=1 // pred_check
      _
    $region23: #{tpu_custom_call.1} parent=1 // pred_check_branch
      %34 = sbr.rel (0) target = $region25
    $region24: #{tpu_custom_call.1} parent=1 // pred_region
      _
    $region25: #{tpu_custom_call.1} parent=1 // pred_fallthru
      _
    // Predicated region
    $region26: #{tpu_custom_call.1} parent=1 // pred_check
      _
    $region27: #{tpu_custom_call.1} parent=1 // pred_check_branch
      %36 = sbr.rel (0) target = $region29
    $region28: #{tpu_custom_call.1} parent=1 // pred_region
      %37 = dma.done [#allocation4], 2048
    $region29: #{tpu_custom_call.1} parent=1 // pred_fallthru
      _
    %v38 = vld [vmem:[%s0] sm:$0x3]
    %v39 = vld [vmem:[%s0 + $0x2] sm:$0x3]
    %v40 = vld [vmem:[%s0 + $0x4] sm:$0x3]
    %v41 = vld [vmem:[%s0 + $0x6] sm:$0x3]
    %v42 = vld [vmem:[%s0 + $0x8] sm:$0x3]
    %v43 = vld [vmem:[%s0 + $0xa] sm:$0x3]
    %v44 = vld [vmem:[%s0 + $0xc] sm:$0x3]
    %v45 = vld [vmem:[%s0 + $0xe] sm:$0x3]
    %v46 = vld [vmem:[%s1] sm:$0xff]
    %v47 = vld [vmem:[%s1 + $0x8] sm:$0xff]
    %v48 = vld [vmem:[%s3] sm:$0x3]
    %v50 = vlaneseq
    %v51 = vshrl.u32 %v50, 7
    %v52 = vsub.s32 0, %v51
    %v53 = vrot.slane %v48, %v52
    %v54 = vlaneseq
    %v55 = vshrl.u32 %v54, 7
    %v56 = vsub.s32 1, %v55
    %v57 = vrot.slane %v48, %v56
    %v68 = vcombine.low %v38, %v39
    %v69 = vcombine.low %v40, %v41
    %v71 = vunpack.c.l.s4 1983009808
    %v72 = vunpack.c.0.s8 %v71
    %v73 = vlaneseq
    %v74 = vshrl.u32 %v73, 7
    %v75 = vsub.s32 %v72, %v74
    %v76 = vrot.slane %v68, %v75
    %v78 = vunpack.c.l.s4 1983009808
    %v79 = vunpack.c.0.s8 %v78
    %v80 = vlaneseq
    %v81 = vshrl.u32 %v80, 7
    %v82 = vsub.s32 %v79, %v81
    %v83 = vrot.slane %v69, %v82
    %v84 = vcombine.low %v76, %v83
    %v85 = vcombine.low %v42, %v43
    %v86 = vcombine.low %v44, %v45
    %v88 = vunpack.c.l.s4 1983009808
    %v89 = vunpack.c.0.s8 %v88
    %v90 = vlaneseq
    %v91 = vshrl.u32 %v90, 7
    %v92 = vsub.s32 %v89, %v91
    %v93 = vrot.slane %v85, %v92
    %v95 = vunpack.c.l.s4 1983009808
    %v96 = vunpack.c.0.s8 %v95
    %v97 = vlaneseq
    %v98 = vshrl.u32 %v97, 7
    %v99 = vsub.s32 %v96, %v98
    %v100 = vrot.slane %v86, %v99
    %v101 = vcombine.low %v93, %v100
    %vm102 = vcmask 64512
    %v103 = vsel %vm102, %v84, 0
    %v105 = vsel %vm102, %v101, 0
    %107 = vmatprep.subr.mxu0 %v47
    %108 = vmatpush1.msra.mxu0 %v46
    %109 = vmatprep.subr.mxu0 0.0
    %110 = vmatpush1.msra.mxu0 0.0
    %111 = vmatprep.subr.mxu0 0.0
    %112 = vmatpush1.msra.mxu0 0.0
    %113 = vmatprep.subr.mxu0 0.0
    %114 = vmatpush1.msra.mxu0 0.0
    %115 = vmatprep.subr.mxu0 0.0
    %116 = vmatpush1.msra.mxu0 0.0
    %117 = vmatprep.subr.mxu0 0.0
    %118 = vmatpush1.msra.mxu0 0.0
    %119 = vmatprep.subr.mxu0 0.0
    %120 = vmatpush1.msra.mxu0 0.0
    %121 = vmatprep.subr.mxu0 0.0
    %122 = vmatpush1.msra.mxu0 0.0
    %123 = vmatprep.subr.mxu0 0.0
    %124 = vmatpush1.msra.mxu0 0.0
    %125 = vmatprep.subr.mxu0 0.0
    %126 = vmatpush1.msra.mxu0 0.0
    %127 = vmatprep.subr.mxu0 0.0
    %128 = vmatpush1.msra.mxu0 0.0
    %129 = vmatprep.subr.mxu0 0.0
    %130 = vmatpush1.msra.mxu0 0.0
    %131 = vmatprep.subr.mxu0 0.0
    %132 = vmatpush1.msra.mxu0 0.0
    %133 = vmatprep.subr.mxu0 0.0
    %134 = vmatpush1.msra.mxu0 0.0
    %135 = vmatprep.subr.mxu0 0.0
    %136 = vmatpush1.msra.mxu0 0.0
    %137 = vmatprep.subr.mxu0 0.0
    %138 = vmatpush1.msra.mxu0 0.0
    %139 = vmatprep.subr.mxu0 0.0
    %140 = vmatpush1.msra.mxu0 0.0
    %141 = vmatprep.subr.mxu0 0.0
    %142 = vmatpush1.msra.mxu0 0.0
    %143 = vmatprep.subr.mxu0 0.0
    %144 = vmatpush1.msra.mxu0 0.0
    %145 = vmatprep.subr.mxu0 0.0
    %146 = vmatpush1.msra.mxu0 0.0
    %147 = vmatprep.subr.mxu0 0.0
    %148 = vmatpush1.msra.mxu0 0.0
    %149 = vmatprep.subr.mxu0 0.0
    %150 = vmatpush1.msra.mxu0 0.0
    %151 = vmatprep.subr.mxu0 0.0
    %152 = vmatpush1.msra.mxu0 0.0
    %153 = vmatprep.subr.mxu0 0.0
    %154 = vmatpush1.msra.mxu0 0.0
    %155 = vmatprep.subr.mxu0 0.0
    %156 = vmatpush1.msra.mxu0 0.0
    %157 = vmatprep.subr.mxu0 0.0
    %158 = vmatpush1.msra.mxu0 0.0
    %159 = vmatprep.subr.mxu0 0.0
    %160 = vmatpush1.msra.mxu0 0.0
    %161 = vmatprep.subr.mxu0 0.0
    %162 = vmatpush1.msra.mxu0 0.0
    %163 = vmatprep.subr.mxu0 0.0
    %164 = vmatpush1.msra.mxu0 0.0
    %165 = vmatprep.subr.mxu0 0.0
    %166 = vmatpush1.msra.mxu0 0.0
    %167 = vmatprep.subr.mxu0 0.0
    %168 = vmatpush1.msra.mxu0 0.0
    %169 = vmatprep.subr.mxu0 0.0
    %170 = vmatpush1.msra.mxu0 0.0
    %171 = vmatprep.mubr.f32.mxu0 0.0
    %172 = vmatmul.mubr.f32.gmra.mrb[0].mxu0 %v103
    %v173 = vpop.f32.mrb[0].mxu0
    %v174 = vadd.f32 %v53, %v173
    %v175 = vpop.f32.mrb[0].mxu0
    %v176 = vadd.f32 %v57, %v175
    %177 = vmatprep.mubr.f32.mxu0 0.0
    %178 = vmatmul.mubr.f32.gmra.mrb[0].mxu0 %v105
    %v179 = vpop.f32.mrb[0].mxu0
    %v180 = vadd.f32 %v53, %v179
    %v181 = vpop.f32.mrb[0].mxu0
    %v182 = vadd.f32 %v57, %v181
    %183 = vdwg.mxu0
    %v188 = vcombine.low %v174, %v176
    %v189 = vcombine.high %v174, %v176
    %v191 = vunpack.c.l.s4 1983009808
    %v192 = vunpack.c.0.s8 %v191
    %v193 = vlaneseq
    %v194 = vshrl.u32 %v193, 7
    %v195 = vsub.s32 %v192, %v194
    %v196 = vrot.slane %v188, %v195
    %v198 = vunpack.c.l.s4 1983009808
    %v199 = vunpack.c.0.s8 %v198
    %v200 = vlaneseq
    %v201 = vshrl.u32 %v200, 7
    %v202 = vsub.s32 %v199, %v201
    %v203 = vrot.slane %v189, %v202
    %v204 = vcombine.high %v196, %v196
    %v205 = vcombine.high %v203, %v203
    %v206 = vcombine.low %v180, %v182
    %v207 = vcombine.high %v180, %v182
    %v209 = vunpack.c.l.s4 1983009808
    %v210 = vunpack.c.0.s8 %v209
    %v211 = vlaneseq
    %v212 = vshrl.u32 %v211, 7
    %v213 = vsub.s32 %v210, %v212
    %v214 = vrot.slane %v206, %v213
    %v216 = vunpack.c.l.s4 1983009808
    %v217 = vunpack.c.0.s8 %v216
    %v218 = vlaneseq
    %v219 = vshrl.u32 %v218, 7
    %v220 = vsub.s32 %v217, %v219
    %v221 = vrot.slane %v207, %v220
    %v222 = vcombine.high %v214, %v214
    %v223 = vcombine.high %v221, %v221
    %232 = vst [vmem:[#allocation2] sm:$0xf] %v196
    %233 = vst [vmem:[#allocation2 + $0x4] sm:$0xf] %v204
    %234 = vst [vmem:[#allocation2 + $0x8] sm:$0xf] %v203
    %235 = vst [vmem:[#allocation2 + $0xc] sm:$0xf] %v205
    %236 = vst [vmem:[#allocation2 + $0x10] sm:$0xf] %v214
    %237 = vst [vmem:[#allocation2 + $0x14] sm:$0xf] %v222
    %238 = vst [vmem:[#allocation2 + $0x18] sm:$0xf] %v221
    %239 = vst [vmem:[#allocation2 + $0x1c] sm:$0xf] %v223
    %v240 = vld [vmem:[#allocation3] sm:$0xff]
    %v241 = vld [vmem:[#allocation3 + $0x8] sm:$0xff]
    %v242 = vld [vmem:[#allocation3 + $0x10] sm:$0xff]
    %v243 = vld [vmem:[#allocation3 + $0x18] sm:$0xff]
    %v244 = vld [vmem:[#allocation3 + $0x20] sm:$0xff]
    %v245 = vld [vmem:[#allocation3 + $0x28] sm:$0xff]
    %v246 = vld [vmem:[#allocation3 + $0x30] sm:$0xff]
    %v247 = vld [vmem:[#allocation3 + $0x38] sm:$0xff]
    %v248 = vld [vmem:[#allocation3 + $0x40] sm:$0xff]
    %v249 = vld [vmem:[#allocation3 + $0x48] sm:$0xff]
    %v250 = vld [vmem:[#allocation3 + $0x50] sm:$0xff]
    %v251 = vld [vmem:[#allocation3 + $0x58] sm:$0xff]
    %v252 = vld [vmem:[#allocation3 + $0x60] sm:$0xff]
    %v253 = vld [vmem:[#allocation3 + $0x68] sm:$0xff]
    %v254 = vld [vmem:[#allocation3 + $0x70] sm:$0xff]
    %v255 = vld [vmem:[#allocation3 + $0x78] sm:$0xff]
    %v256 = vld [vmem:[#allocation2] sm:$0xf]
    %vm257 = vcmask 523264
    %v259 = vsel %vm257, 0.0, 0
    %261 = vmatprep.subr.mxu0 %v241
    %262 = vmatpush1.msra.mxu0 %v240
    %263 = vmatprep.subr.mxu0 %v243
    %264 = vmatpush1.msra.mxu0 %v242
    %265 = vmatprep.subr.mxu0 %v245
    %266 = vmatpush1.msra.mxu0 %v244
    %267 = vmatprep.subr.mxu0 %v247
    %268 = vmatpush1.msra.mxu0 %v246
    %269 = vmatprep.subr.mxu0 %v249
    %270 = vmatpush1.msra.mxu0 %v248
    %271 = vmatprep.subr.mxu0 %v251
    %272 = vmatpush1.msra.mxu0 %v250
    %273 = vmatprep.subr.mxu0 %v253
    %274 = vmatpush1.msra.mxu0 %v252
    %275 = vmatprep.subr.mxu0 %v255
    %276 = vmatpush1.msra.mxu0 %v254
    %277 = vmatprep.subr.mxu0 0.0
    %278 = vmatpush1.msra.mxu0 0.0
    %279 = vmatprep.subr.mxu0 0.0
    %280 = vmatpush1.msra.mxu0 0.0
    %281 = vmatprep.subr.mxu0 0.0
    %282 = vmatpush1.msra.mxu0 0.0
    %283 = vmatprep.subr.mxu0 0.0
    %284 = vmatpush1.msra.mxu0 0.0
    %285 = vmatprep.subr.mxu0 0.0
    %286 = vmatpush1.msra.mxu0 0.0
    %287 = vmatprep.subr.mxu0 0.0
    %288 = vmatpush1.msra.mxu0 0.0
    %289 = vmatprep.subr.mxu0 0.0
    %290 = vmatpush1.msra.mxu0 0.0
    %291 = vmatprep.subr.mxu0 0.0
    %292 = vmatpush1.msra.mxu0 0.0
    %293 = vmatprep.subr.mxu0 0.0
    %294 = vmatpush1.msra.mxu0 0.0
    %295 = vmatprep.subr.mxu0 0.0
    %296 = vmatpush1.msra.mxu0 0.0
    %297 = vmatprep.subr.mxu0 0.0
    %298 = vmatpush1.msra.mxu0 0.0
    %299 = vmatprep.subr.mxu0 0.0
    %300 = vmatpush1.msra.mxu0 0.0
    %301 = vmatprep.subr.mxu0 0.0
    %302 = vmatpush1.msra.mxu0 0.0
    %303 = vmatprep.subr.mxu0 0.0
    %304 = vmatpush1.msra.mxu0 0.0
    %305 = vmatprep.subr.mxu0 0.0
    %306 = vmatpush1.msra.mxu0 0.0
    %307 = vmatprep.subr.mxu0 0.0
    %308 = vmatpush1.msra.mxu0 0.0
    %309 = vmatprep.subr.mxu0 0.0
    %310 = vmatpush1.msra.mxu0 0.0
    %311 = vmatprep.subr.mxu0 0.0
    %312 = vmatpush1.msra.mxu0 0.0
    %313 = vmatprep.subr.mxu0 0.0
    %314 = vmatpush1.msra.mxu0 0.0
    %315 = vmatprep.subr.mxu0 0.0
    %316 = vmatpush1.msra.mxu0 0.0
    %317 = vmatprep.subr.mxu0 0.0
    %318 = vmatpush1.msra.mxu0 0.0
    %319 = vmatprep.subr.mxu0 0.0
    %320 = vmatpush1.msra.mxu0 0.0
    %321 = vmatprep.subr.mxu0 0.0
    %322 = vmatpush1.msra.mxu0 0.0
    %323 = vmatprep.subr.mxu0 0.0
    %324 = vmatpush1.msra.mxu0 0.0
    %325 = vmatprep.mubr.f32.mxu0 0.0
    %326 = vmatmul.mubr.f32.gmra.mrb[0].mxu0 %v259
    %v327 = vpop.f32.mrb[0].mxu0
    %v328 = vadd.f32 0.0, %v327
    %v329 = vpop.f32.mrb[0].mxu0
    %v330 = vadd.f32 0.0, %v329
    %331 = vdwg.mxu0
    %v334 = vcombine.low %v328, %v330
    %v336 = vunpack.c.l.s4 1983009808
    %v337 = vunpack.c.0.s8 %v336
    %v338 = vlaneseq
    %v339 = vshrl.u32 %v338, 7
    %v340 = vsub.s32 %v337, %v339
    %v341 = vrot.slane %v334, %v340
    %v343 = vadd.f32 %v256, %v341
    %v344 = vxor.u32 %v343, 2147483648
    %v345 = vmul.f32 %v344, 1.442695
    %v346 = vpow.pop %v345
    %v347 = vadd.f32 %v346, 1.0
    %v348 = vrcp.pop %v347
    %v349 = vmul.f32 1.0, %v348
    %351 = vrot.lane.b32.xlu0 %v343, 64
    %v352 = vpop.permute.xlu0 %351
    %v353 = vrot.slane %v352, 2
    %v355 = vtanh.pop %v353
    %v356 = vmul.f32 %v349, 0.0
    %v357 = vmul.f32 %v349, %v355
    %359 = vrot.lane.b32.xlu0 %v357, 64
    %v360 = vpop.permute.xlu0 %359
    %v362 = vadd.f32 %v356, %v360
    %v363 = vtanh.pop %v362
    %v365 = vrot.slane %v349, 2
    %368 = vrot.lane.b32.xlu0 %v363, 64
    %v369 = vpop.permute.xlu0 %368
    %v371 = vmul.f32 %v365, %v369
    %s372 = scalar_lea.vmem [#allocation2], 4
    %v373 = vld [vmem:[%s372] sm:$0xf]
    %v375 = vsel %vm257, %v371, 0
    %377 = vmatprep.subr.mxu0 %v241
    %378 = vmatpush1.msra.mxu0 %v240
    %379 = vmatprep.subr.mxu0 %v243
    %380 = vmatpush1.msra.mxu0 %v242
    %381 = vmatprep.subr.mxu0 %v245
    %382 = vmatpush1.msra.mxu0 %v244
    %383 = vmatprep.subr.mxu0 %v247
    %384 = vmatpush1.msra.mxu0 %v246
    %385 = vmatprep.subr.mxu0 %v249
    %386 = vmatpush1.msra.mxu0 %v248
    %387 = vmatprep.subr.mxu0 %v251
    %388 = vmatpush1.msra.mxu0 %v250
    %389 = vmatprep.subr.mxu0 %v253
    %390 = vmatpush1.msra.mxu0 %v252
    %391 = vmatprep.subr.mxu0 %v255
    %392 = vmatpush1.msra.mxu0 %v254
    %393 = vmatprep.subr.mxu0 0.0
    %394 = vmatpush1.msra.mxu0 0.0
    %395 = vmatprep.subr.mxu0 0.0
    %396 = vmatpush1.msra.mxu0 0.0
    %397 = vmatprep.subr.mxu0 0.0
    %398 = vmatpush1.msra.mxu0 0.0
    %399 = vmatprep.subr.mxu0 0.0
    %400 = vmatpush1.msra.mxu0 0.0
    %401 = vmatprep.subr.mxu0 0.0
    %402 = vmatpush1.msra.mxu0 0.0
    %403 = vmatprep.subr.mxu0 0.0
    %404 = vmatpush1.msra.mxu0 0.0
    %405 = vmatprep.subr.mxu0 0.0
    %406 = vmatpush1.msra.mxu0 0.0
    %407 = vmatprep.subr.mxu0 0.0
    %408 = vmatpush1.msra.mxu0 0.0
    %409 = vmatprep.subr.mxu0 0.0
    %410 = vmatpush1.msra.mxu0 0.0
    %411 = vmatprep.subr.mxu0 0.0
    %412 = vmatpush1.msra.mxu0 0.0
    %413 = vmatprep.subr.mxu0 0.0
    %414 = vmatpush1.msra.mxu0 0.0
    %415 = vmatprep.subr.mxu0 0.0
    %416 = vmatpush1.msra.mxu0 0.0
    %417 = vmatprep.subr.mxu0 0.0
    %418 = vmatpush1.msra.mxu0 0.0
    %419 = vmatprep.subr.mxu0 0.0
    %420 = vmatpush1.msra.mxu0 0.0
    %421 = vmatprep.subr.mxu0 0.0
    %422 = vmatpush1.msra.mxu0 0.0
    %423 = vmatprep.subr.mxu0 0.0
    %424 = vmatpush1.msra.mxu0 0.0
    %425 = vmatprep.subr.mxu0 0.0
    %426 = vmatpush1.msra.mxu0 0.0
    %427 = vmatprep.subr.mxu0 0.0
    %428 = vmatpush1.msra.mxu0 0.0
    %429 = vmatprep.subr.mxu0 0.0
    %430 = vmatpush1.msra.mxu0 0.0
    %431 = vmatprep.subr.mxu0 0.0
    %432 = vmatpush1.msra.mxu0 0.0
    %433 = vmatprep.subr.mxu0 0.0
    %434 = vmatpush1.msra.mxu0 0.0
    %435 = vmatprep.subr.mxu0 0.0
    %436 = vmatpush1.msra.mxu0 0.0
    %437 = vmatprep.subr.mxu0 0.0
    %438 = vmatpush1.msra.mxu0 0.0
    %439 = vmatprep.subr.mxu0 0.0
    %440 = vmatpush1.msra.mxu0 0.0
    %441 = vmatprep.mubr.f32.mxu0 0.0
    %442 = vmatmul.mubr.f32.gmra.mrb[0].mxu0 %v375
    %v443 = vpop.f32.mrb[0].mxu0
    %v444 = vadd.f32 0.0, %v443
    %v445 = vpop.f32.mrb[0].mxu0
    %v446 = vadd.f32 0.0, %v445
    %447 = vdwg.mxu0
    %v450 = vcombine.low %v444, %v446
    %v452 = vunpack.c.l.s4 1983009808
    %v453 = vunpack.c.0.s8 %v452
    %v454 = vlaneseq
    %v455 = vshrl.u32 %v454, 7
    %v456 = vsub.s32 %v453, %v455
    %v457 = vrot.slane %v450, %v456
    %v459 = vadd.f32 %v373, %v457
    %v460 = vxor.u32 %v459, 2147483648
    %v461 = vmul.f32 %v460, 1.442695
    %v462 = vpow.pop %v461
    %v463 = vadd.f32 %v462, 1.0
    %v464 = vrcp.pop %v463
    %v465 = vmul.f32 1.0, %v464
    %467 = vrot.lane.b32.xlu0 %v459, 64
    %v468 = vpop.permute.xlu0 %467
    %v469 = vrot.slane %v468, 2
    %v471 = vtanh.pop %v469
    %v472 = vmul.f32 %v465, %v362
    %v473 = vmul.f32 %v465, %v471
    %475 = vrot.lane.b32.xlu0 %v473, 64
    %v476 = vpop.permute.xlu0 %475
    %v478 = vadd.f32 %v472, %v476
    %v479 = vtanh.pop %v478
    %v481 = vrot.slane %v465, 2
    %484 = vrot.lane.b32.xlu0 %v479, 64
    %v485 = vpop.permute.xlu0 %484
    %v487 = vmul.f32 %v481, %v485
    %s488 = scalar_lea.vmem [#allocation2], 8
    %v489 = vld [vmem:[%s488] sm:$0xf]
    %v491 = vsel %vm257, %v487, 0
    %493 = vmatprep.subr.mxu0 %v241
    %494 = vmatpush1.msra.mxu0 %v240
    %495 = vmatprep.subr.mxu0 %v243
    %496 = vmatpush1.msra.mxu0 %v242
    %497 = vmatprep.subr.mxu0 %v245
    %498 = vmatpush1.msra.mxu0 %v244
    %499 = vmatprep.subr.mxu0 %v247
    %500 = vmatpush1.msra.mxu0 %v246
    %501 = vmatprep.subr.mxu0 %v249
    %502 = vmatpush1.msra.mxu0 %v248
    %503 = vmatprep.subr.mxu0 %v251
    %504 = vmatpush1.msra.mxu0 %v250
    %505 = vmatprep.subr.mxu0 %v253
    %506 = vmatpush1.msra.mxu0 %v252
    %507 = vmatprep.subr.mxu0 %v255
    %508 = vmatpush1.msra.mxu0 %v254
    %509 = vmatprep.subr.mxu0 0.0
    %510 = vmatpush1.msra.mxu0 0.0
    %511 = vmatprep.subr.mxu0 0.0
    %512 = vmatpush1.msra.mxu0 0.0
    %513 = vmatprep.subr.mxu0 0.0
    %514 = vmatpush1.msra.mxu0 0.0
    %515 = vmatprep.subr.mxu0 0.0
    %516 = vmatpush1.msra.mxu0 0.0
    %517 = vmatprep.subr.mxu0 0.0
    %518 = vmatpush1.msra.mxu0 0.0
    %519 = vmatprep.subr.mxu0 0.0
    %520 = vmatpush1.msra.mxu0 0.0
    %521 = vmatprep.subr.mxu0 0.0
    %522 = vmatpush1.msra.mxu0 0.0
    %523 = vmatprep.subr.mxu0 0.0
    %524 = vmatpush1.msra.mxu0 0.0
    %525 = vmatprep.subr.mxu0 0.0
    %526 = vmatpush1.msra.mxu0 0.0
    %527 = vmatprep.subr.mxu0 0.0
    %528 = vmatpush1.msra.mxu0 0.0
    %529 = vmatprep.subr.mxu0 0.0
    %530 = vmatpush1.msra.mxu0 0.0
    %531 = vmatprep.subr.mxu0 0.0
    %532 = vmatpush1.msra.mxu0 0.0
    %533 = vmatprep.subr.mxu0 0.0
    %534 = vmatpush1.msra.mxu0 0.0
    %535 = vmatprep.subr.mxu0 0.0
    %536 = vmatpush1.msra.mxu0 0.0
    %537 = vmatprep.subr.mxu0 0.0
    %538 = vmatpush1.msra.mxu0 0.0
    %539 = vmatprep.subr.mxu0 0.0
    %540 = vmatpush1.msra.mxu0 0.0
    %541 = vmatprep.subr.mxu0 0.0
    %542 = vmatpush1.msra.mxu0 0.0
    %543 = vmatprep.subr.mxu0 0.0
    %544 = vmatpush1.msra.mxu0 0.0
    %545 = vmatprep.subr.mxu0 0.0
    %546 = vmatpush1.msra.mxu0 0.0
    %547 = vmatprep.subr.mxu0 0.0
    %548 = vmatpush1.msra.mxu0 0.0
    %549 = vmatprep.subr.mxu0 0.0
    %550 = vmatpush1.msra.mxu0 0.0
    %551 = vmatprep.subr.mxu0 0.0
    %552 = vmatpush1.msra.mxu0 0.0
    %553 = vmatprep.subr.mxu0 0.0
    %554 = vmatpush1.msra.mxu0 0.0
    %555 = vmatprep.subr.mxu0 0.0
    %556 = vmatpush1.msra.mxu0 0.0
    %557 = vmatprep.mubr.f32.mxu0 0.0
    %558 = vmatmul.mubr.f32.gmra.mrb[0].mxu0 %v491
    %v559 = vpop.f32.mrb[0].mxu0
    %v560 = vadd.f32 0.0, %v559
    %v561 = vpop.f32.mrb[0].mxu0
    %v562 = vadd.f32 0.0, %v561
    %563 = vdwg.mxu0
    %v566 = vcombine.low %v560, %v562
    %v568 = vunpack.c.l.s4 1983009808
    %v569 = vunpack.c.0.s8 %v568
    %v570 = vlaneseq
    %v571 = vshrl.u32 %v570, 7
    %v572 = vsub.s32 %v569, %v571
    %v573 = vrot.slane %v566, %v572
    %v575 = vadd.f32 %v489, %v573
    %v576 = vxor.u32 %v575, 2147483648
    %v577 = vmul.f32 %v576, 1.442695
    %v578 = vpow.pop %v577
    %v579 = vadd.f32 %v578, 1.0
    %v580 = vrcp.pop %v579
    %v581 = vmul.f32 1.0, %v580
    %583 = vrot.lane.b32.xlu0 %v575, 64
    %v584 = vpop.permute.xlu0 %583
    %v585 = vrot.slane %v584, 2
    %v587 = vtanh.pop %v585
    %v588 = vmul.f32 %v581, %v478
    %v589 = vmul.f32 %v581, %v587
    %591 = vrot.lane.b32.xlu0 %v589, 64
    %v592 = vpop.permute.xlu0 %591
    %v594 = vadd.f32 %v588, %v592
    %v595 = vtanh.pop %v594
    %v597 = vrot.slane %v581, 2
    %600 = vrot.lane.b32.xlu0 %v595, 64
    %v601 = vpop.permute.xlu0 %600
    %v603 = vmul.f32 %v597, %v601
    %s604 = scalar_lea.vmem [#allocation2], 12
    %v605 = vld [vmem:[%s604] sm:$0xf]
    %v607 = vsel %vm257, %v603, 0
    %609 = vmatprep.subr.mxu0 %v241
    %610 = vmatpush1.msra.mxu0 %v240
    %611 = vmatprep.subr.mxu0 %v243
    %612 = vmatpush1.msra.mxu0 %v242
    %613 = vmatprep.subr.mxu0 %v245
    %614 = vmatpush1.msra.mxu0 %v244
    %615 = vmatprep.subr.mxu0 %v247
    %616 = vmatpush1.msra.mxu0 %v246
    %617 = vmatprep.subr.mxu0 %v249
    %618 = vmatpush1.msra.mxu0 %v248
    %619 = vmatprep.subr.mxu0 %v251
    %620 = vmatpush1.msra.mxu0 %v250
    %621 = vmatprep.subr.mxu0 %v253
    %622 = vmatpush1.msra.mxu0 %v252
    %623 = vmatprep.subr.mxu0 %v255
    %624 = vmatpush1.msra.mxu0 %v254
    %625 = vmatprep.subr.mxu0 0.0
    %626 = vmatpush1.msra.mxu0 0.0
    %627 = vmatprep.subr.mxu0 0.0
    %628 = vmatpush1.msra.mxu0 0.0
    %629 = vmatprep.subr.mxu0 0.0
    %630 = vmatpush1.msra.mxu0 0.0
    %631 = vmatprep.subr.mxu0 0.0
    %632 = vmatpush1.msra.mxu0 0.0
    %633 = vmatprep.subr.mxu0 0.0
    %634 = vmatpush1.msra.mxu0 0.0
    %635 = vmatprep.subr.mxu0 0.0
    %636 = vmatpush1.msra.mxu0 0.0
    %637 = vmatprep.subr.mxu0 0.0
    %638 = vmatpush1.msra.mxu0 0.0
    %639 = vmatprep.subr.mxu0 0.0
    %640 = vmatpush1.msra.mxu0 0.0
    %641 = vmatprep.subr.mxu0 0.0
    %642 = vmatpush1.msra.mxu0 0.0
    %643 = vmatprep.subr.mxu0 0.0
    %644 = vmatpush1.msra.mxu0 0.0
    %645 = vmatprep.subr.mxu0 0.0
    %646 = vmatpush1.msra.mxu0 0.0
    %647 = vmatprep.subr.mxu0 0.0
    %648 = vmatpush1.msra.mxu0 0.0
    %649 = vmatprep.subr.mxu0 0.0
    %650 = vmatpush1.msra.mxu0 0.0
    %651 = vmatprep.subr.mxu0 0.0
    %652 = vmatpush1.msra.mxu0 0.0
    %653 = vmatprep.subr.mxu0 0.0
    %654 = vmatpush1.msra.mxu0 0.0
    %655 = vmatprep.subr.mxu0 0.0
    %656 = vmatpush1.msra.mxu0 0.0
    %657 = vmatprep.subr.mxu0 0.0
    %658 = vmatpush1.msra.mxu0 0.0
    %659 = vmatprep.subr.mxu0 0.0
    %660 = vmatpush1.msra.mxu0 0.0
    %661 = vmatprep.subr.mxu0 0.0
    %662 = vmatpush1.msra.mxu0 0.0
    %663 = vmatprep.subr.mxu0 0.0
    %664 = vmatpush1.msra.mxu0 0.0
    %665 = vmatprep.subr.mxu0 0.0
    %666 = vmatpush1.msra.mxu0 0.0
    %667 = vmatprep.subr.mxu0 0.0
    %668 = vmatpush1.msra.mxu0 0.0
    %669 = vmatprep.subr.mxu0 0.0
    %670 = vmatpush1.msra.mxu0 0.0
    %671 = vmatprep.subr.mxu0 0.0
    %672 = vmatpush1.msra.mxu0 0.0
    %673 = vmatprep.mubr.f32.mxu0 0.0
    %674 = vmatmul.mubr.f32.gmra.mrb[0].mxu0 %v607
    %v675 = vpop.f32.mrb[0].mxu0
    %v676 = vadd.f32 0.0, %v675
    %v677 = vpop.f32.mrb[0].mxu0
    %v678 = vadd.f32 0.0, %v677
    %679 = vdwg.mxu0
    %v682 = vcombine.low %v676, %v678
    %v684 = vunpack.c.l.s4 1983009808
    %v685 = vunpack.c.0.s8 %v684
    %v686 = vlaneseq
    %v687 = vshrl.u32 %v686, 7
    %v688 = vsub.s32 %v685, %v687
    %v689 = vrot.slane %v682, %v688
    %v691 = vadd.f32 %v605, %v689
    %v692 = vxor.u32 %v691, 2147483648
    %v693 = vmul.f32 %v692, 1.442695
    %v694 = vpow.pop %v693
    %v695 = vadd.f32 %v694, 1.0
    %v696 = vrcp.pop %v695
    %v697 = vmul.f32 1.0, %v696
    %699 = vrot.lane.b32.xlu0 %v691, 64
    %v700 = vpop.permute.xlu0 %699
    %v701 = vrot.slane %v700, 2
    %v703 = vtanh.pop %v701
    %v704 = vmul.f32 %v697, %v594
    %v705 = vmul.f32 %v697, %v703
    %707 = vrot.lane.b32.xlu0 %v705, 64
    %v708 = vpop.permute.xlu0 %707
    %v710 = vadd.f32 %v704, %v708
    %v711 = vtanh.pop %v710
    %v713 = vrot.slane %v697, 2
    %716 = vrot.lane.b32.xlu0 %v711, 64
    %v717 = vpop.permute.xlu0 %716
    %v719 = vmul.f32 %v713, %v717
    %s720 = scalar_lea.vmem [#allocation2], 16
    %v721 = vld [vmem:[%s720] sm:$0xf]
    %v723 = vsel %vm257, %v719, 0
    %725 = vmatprep.subr.mxu0 %v241
    %726 = vmatpush1.msra.mxu0 %v240
    %727 = vmatprep.subr.mxu0 %v243
    %728 = vmatpush1.msra.mxu0 %v242
    %729 = vmatprep.subr.mxu0 %v245
    %730 = vmatpush1.msra.mxu0 %v244
    %731 = vmatprep.subr.mxu0 %v247
    %732 = vmatpush1.msra.mxu0 %v246
    %733 = vmatprep.subr.mxu0 %v249
    %734 = vmatpush1.msra.mxu0 %v248
    %735 = vmatprep.subr.mxu0 %v251
    %736 = vmatpush1.msra.mxu0 %v250
    %737 = vmatprep.subr.mxu0 %v253
    %738 = vmatpush1.msra.mxu0 %v252
    %739 = vmatprep.subr.mxu0 %v255
    %740 = vmatpush1.msra.mxu0 %v254
    %741 = vmatprep.subr.mxu0 0.0
    %742 = vmatpush1.msra.mxu0 0.0
    %743 = vmatprep.subr.mxu0 0.0
    %744 = vmatpush1.msra.mxu0 0.0
    %745 = vmatprep.subr.mxu0 0.0
    %746 = vmatpush1.msra.mxu0 0.0
    %747 = vmatprep.subr.mxu0 0.0
    %748 = vmatpush1.msra.mxu0 0.0
    %749 = vmatprep.subr.mxu0 0.0
    %750 = vmatpush1.msra.mxu0 0.0
    %751 = vmatprep.subr.mxu0 0.0
    %752 = vmatpush1.msra.mxu0 0.0
    %753 = vmatprep.subr.mxu0 0.0
    %754 = vmatpush1.msra.mxu0 0.0
    %755 = vmatprep.subr.mxu0 0.0
    %756 = vmatpush1.msra.mxu0 0.0
    %757 = vmatprep.subr.mxu0 0.0
    %758 = vmatpush1.msra.mxu0 0.0
    %759 = vmatprep.subr.mxu0 0.0
    %760 = vmatpush1.msra.mxu0 0.0
    %761 = vmatprep.subr.mxu0 0.0
    %762 = vmatpush1.msra.mxu0 0.0
    %763 = vmatprep.subr.mxu0 0.0
    %764 = vmatpush1.msra.mxu0 0.0
    %765 = vmatprep.subr.mxu0 0.0
    %766 = vmatpush1.msra.mxu0 0.0
    %767 = vmatprep.subr.mxu0 0.0
    %768 = vmatpush1.msra.mxu0 0.0
    %769 = vmatprep.subr.mxu0 0.0
    %770 = vmatpush1.msra.mxu0 0.0
    %771 = vmatprep.subr.mxu0 0.0
    %772 = vmatpush1.msra.mxu0 0.0
    %773 = vmatprep.subr.mxu0 0.0
    %774 = vmatpush1.msra.mxu0 0.0
    %775 = vmatprep.subr.mxu0 0.0
    %776 = vmatpush1.msra.mxu0 0.0
    %777 = vmatprep.subr.mxu0 0.0
    %778 = vmatpush1.msra.mxu0 0.0
    %779 = vmatprep.subr.mxu0 0.0
    %780 = vmatpush1.msra.mxu0 0.0
    %781 = vmatprep.subr.mxu0 0.0
    %782 = vmatpush1.msra.mxu0 0.0
    %783 = vmatprep.subr.mxu0 0.0
    %784 = vmatpush1.msra.mxu0 0.0
    %785 = vmatprep.subr.mxu0 0.0
    %786 = vmatpush1.msra.mxu0 0.0
    %787 = vmatprep.subr.mxu0 0.0
    %788 = vmatpush1.msra.mxu0 0.0
    %789 = vmatprep.mubr.f32.mxu0 0.0
    %790 = vmatmul.mubr.f32.gmra.mrb[0].mxu0 %v723
    %v791 = vpop.f32.mrb[0].mxu0
    %v792 = vadd.f32 0.0, %v791
    %v793 = vpop.f32.mrb[0].mxu0
    %v794 = vadd.f32 0.0, %v793
    %795 = vdwg.mxu0
    %v798 = vcombine.low %v792, %v794
    %v800 = vunpack.c.l.s4 1983009808
    %v801 = vunpack.c.0.s8 %v800
    %v802 = vlaneseq
    %v803 = vshrl.u32 %v802, 7
    %v804 = vsub.s32 %v801, %v803
    %v805 = vrot.slane %v798, %v804
    %v807 = vadd.f32 %v721, %v805
    %v808 = vxor.u32 %v807, 2147483648
    %v809 = vmul.f32 %v808, 1.442695
    %v810 = vpow.pop %v809
    %v811 = vadd.f32 %v810, 1.0
    %v812 = vrcp.pop %v811
    %v813 = vmul.f32 1.0, %v812
    %815 = vrot.lane.b32.xlu0 %v807, 64
    %v816 = vpop.permute.xlu0 %815
    %v817 = vrot.slane %v816, 2
    %v819 = vtanh.pop %v817
    %v820 = vmul.f32 %v813, %v710
    %v821 = vmul.f32 %v813, %v819
    %823 = vrot.lane.b32.xlu0 %v821, 64
    %v824 = vpop.permute.xlu0 %823
    %v826 = vadd.f32 %v820, %v824
    %v827 = vtanh.pop %v826
    %v829 = vrot.slane %v813, 2
    %832 = vrot.lane.b32.xlu0 %v827, 64
    %v833 = vpop.permute.xlu0 %832
    %v835 = vmul.f32 %v829, %v833
    %s836 = scalar_lea.vmem [#allocation2], 20
    %v837 = vld [vmem:[%s836] sm:$0xf]
    %v839 = vsel %vm257, %v835, 0
    %841 = vmatprep.subr.mxu0 %v241
    %842 = vmatpush1.msra.mxu0 %v240
    %843 = vmatprep.subr.mxu0 %v243
    %844 = vmatpush1.msra.mxu0 %v242
    %845 = vmatprep.subr.mxu0 %v245
    %846 = vmatpush1.msra.mxu0 %v244
    %847 = vmatprep.subr.mxu0 %v247
    %848 = vmatpush1.msra.mxu0 %v246
    %849 = vmatprep.subr.mxu0 %v249
    %850 = vmatpush1.msra.mxu0 %v248
    %851 = vmatprep.subr.mxu0 %v251
    %852 = vmatpush1.msra.mxu0 %v250
    %853 = vmatprep.subr.mxu0 %v253
    %854 = vmatpush1.msra.mxu0 %v252
    %855 = vmatprep.subr.mxu0 %v255
    %856 = vmatpush1.msra.mxu0 %v254
    %857 = vmatprep.subr.mxu0 0.0
    %858 = vmatpush1.msra.mxu0 0.0
    %859 = vmatprep.subr.mxu0 0.0
    %860 = vmatpush1.msra.mxu0 0.0
    %861 = vmatprep.subr.mxu0 0.0
    %862 = vmatpush1.msra.mxu0 0.0
    %863 = vmatprep.subr.mxu0 0.0
    %864 = vmatpush1.msra.mxu0 0.0
    %865 = vmatprep.subr.mxu0 0.0
    %866 = vmatpush1.msra.mxu0 0.0
    %867 = vmatprep.subr.mxu0 0.0
    %868 = vmatpush1.msra.mxu0 0.0
    %869 = vmatprep.subr.mxu0 0.0
    %870 = vmatpush1.msra.mxu0 0.0
    %871 = vmatprep.subr.mxu0 0.0
    %872 = vmatpush1.msra.mxu0 0.0
    %873 = vmatprep.subr.mxu0 0.0
    %874 = vmatpush1.msra.mxu0 0.0
    %875 = vmatprep.subr.mxu0 0.0
    %876 = vmatpush1.msra.mxu0 0.0
    %877 = vmatprep.subr.mxu0 0.0
    %878 = vmatpush1.msra.mxu0 0.0
    %879 = vmatprep.subr.mxu0 0.0
    %880 = vmatpush1.msra.mxu0 0.0
    %881 = vmatprep.subr.mxu0 0.0
    %882 = vmatpush1.msra.mxu0 0.0
    %883 = vmatprep.subr.mxu0 0.0
    %884 = vmatpush1.msra.mxu0 0.0
    %885 = vmatprep.subr.mxu0 0.0
    %886 = vmatpush1.msra.mxu0 0.0
    %887 = vmatprep.subr.mxu0 0.0
    %888 = vmatpush1.msra.mxu0 0.0
    %889 = vmatprep.subr.mxu0 0.0
    %890 = vmatpush1.msra.mxu0 0.0
    %891 = vmatprep.subr.mxu0 0.0
    %892 = vmatpush1.msra.mxu0 0.0
    %893 = vmatprep.subr.mxu0 0.0
    %894 = vmatpush1.msra.mxu0 0.0
    %895 = vmatprep.subr.mxu0 0.0
    %896 = vmatpush1.msra.mxu0 0.0
    %897 = vmatprep.subr.mxu0 0.0
    %898 = vmatpush1.msra.mxu0 0.0
    %899 = vmatprep.subr.mxu0 0.0
    %900 = vmatpush1.msra.mxu0 0.0
    %901 = vmatprep.subr.mxu0 0.0
    %902 = vmatpush1.msra.mxu0 0.0
    %903 = vmatprep.subr.mxu0 0.0
    %904 = vmatpush1.msra.mxu0 0.0
    %905 = vmatprep.mubr.f32.mxu0 0.0
    %906 = vmatmul.mubr.f32.gmra.mrb[0].mxu0 %v839
    %v907 = vpop.f32.mrb[0].mxu0
    %v908 = vadd.f32 0.0, %v907
    %v909 = vpop.f32.mrb[0].mxu0
    %v910 = vadd.f32 0.0, %v909
    %911 = vdwg.mxu0
    %v914 = vcombine.low %v908, %v910
    %v916 = vunpack.c.l.s4 1983009808
    %v917 = vunpack.c.0.s8 %v916
    %v918 = vlaneseq
    %v919 = vshrl.u32 %v918, 7
    %v920 = vsub.s32 %v917, %v919
    %v921 = vrot.slane %v914, %v920
    %v923 = vadd.f32 %v837, %v921
    %v924 = vxor.u32 %v923, 2147483648
    %v925 = vmul.f32 %v924, 1.442695
    %v926 = vpow.pop %v925
    %v927 = vadd.f32 %v926, 1.0
    %v928 = vrcp.pop %v927
    %v929 = vmul.f32 1.0, %v928
    %931 = vrot.lane.b32.xlu0 %v923, 64
    %v932 = vpop.permute.xlu0 %931
    %v933 = vrot.slane %v932, 2
    %v935 = vtanh.pop %v933
    %v936 = vmul.f32 %v929, %v826
    %v937 = vmul.f32 %v929, %v935
    %939 = vrot.lane.b32.xlu0 %v937, 64
    %v940 = vpop.permute.xlu0 %939
    %v942 = vadd.f32 %v936, %v940
    %v943 = vtanh.pop %v942
    %v945 = vrot.slane %v929, 2
    %948 = vrot.lane.b32.xlu0 %v943, 64
    %v949 = vpop.permute.xlu0 %948
    %v951 = vmul.f32 %v945, %v949
    %s952 = scalar_lea.vmem [#allocation2], 24
    %v953 = vld [vmem:[%s952] sm:$0xf]
    %v955 = vsel %vm257, %v951, 0
    %957 = vmatprep.subr.mxu0 %v241
    %958 = vmatpush1.msra.mxu0 %v240
    %959 = vmatprep.subr.mxu0 %v243
    %960 = vmatpush1.msra.mxu0 %v242
    %961 = vmatprep.subr.mxu0 %v245
    %962 = vmatpush1.msra.mxu0 %v244
    %963 = vmatprep.subr.mxu0 %v247
    %964 = vmatpush1.msra.mxu0 %v246
    %965 = vmatprep.subr.mxu0 %v249
    %966 = vmatpush1.msra.mxu0 %v248
    %967 = vmatprep.subr.mxu0 %v251
    %968 = vmatpush1.msra.mxu0 %v250
    %969 = vmatprep.subr.mxu0 %v253
    %970 = vmatpush1.msra.mxu0 %v252
    %971 = vmatprep.subr.mxu0 %v255
    %972 = vmatpush1.msra.mxu0 %v254
    %973 = vmatprep.subr.mxu0 0.0
    %974 = vmatpush1.msra.mxu0 0.0
    %975 = vmatprep.subr.mxu0 0.0
    %976 = vmatpush1.msra.mxu0 0.0
    %977 = vmatprep.subr.mxu0 0.0
    %978 = vmatpush1.msra.mxu0 0.0
    %979 = vmatprep.subr.mxu0 0.0
    %980 = vmatpush1.msra.mxu0 0.0
    %981 = vmatprep.subr.mxu0 0.0
    %982 = vmatpush1.msra.mxu0 0.0
    %983 = vmatprep.subr.mxu0 0.0
    %984 = vmatpush1.msra.mxu0 0.0
    %985 = vmatprep.subr.mxu0 0.0
    %986 = vmatpush1.msra.mxu0 0.0
    %987 = vmatprep.subr.mxu0 0.0
    %988 = vmatpush1.msra.mxu0 0.0
    %989 = vmatprep.subr.mxu0 0.0
    %990 = vmatpush1.msra.mxu0 0.0
    %991 = vmatprep.subr.mxu0 0.0
    %992 = vmatpush1.msra.mxu0 0.0
    %993 = vmatprep.subr.mxu0 0.0
    %994 = vmatpush1.msra.mxu0 0.0
    %995 = vmatprep.subr.mxu0 0.0
    %996 = vmatpush1.msra.mxu0 0.0
    %997 = vmatprep.subr.mxu0 0.0
    %998 = vmatpush1.msra.mxu0 0.0
    %999 = vmatprep.subr.mxu0 0.0
    %1000 = vmatpush1.msra.mxu0 0.0
    %1001 = vmatprep.subr.mxu0 0.0
    %1002 = vmatpush1.msra.mxu0 0.0
    %1003 = vmatprep.subr.mxu0 0.0
    %1004 = vmatpush1.msra.mxu0 0.0
    %1005 = vmatprep.subr.mxu0 0.0
    %1006 = vmatpush1.msra.mxu0 0.0
    %1007 = vmatprep.subr.mxu0 0.0
    %1008 = vmatpush1.msra.mxu0 0.0
    %1009 = vmatprep.subr.mxu0 0.0
    %1010 = vmatpush1.msra.mxu0 0.0
    %1011 = vmatprep.subr.mxu0 0.0
    %1012 = vmatpush1.msra.mxu0 0.0
    %1013 = vmatprep.subr.mxu0 0.0
    %1014 = vmatpush1.msra.mxu0 0.0
    %1015 = vmatprep.subr.mxu0 0.0
    %1016 = vmatpush1.msra.mxu0 0.0
    %1017 = vmatprep.subr.mxu0 0.0
    %1018 = vmatpush1.msra.mxu0 0.0
    %1019 = vmatprep.subr.mxu0 0.0
    %1020 = vmatpush1.msra.mxu0 0.0
    %1021 = vmatprep.mubr.f32.mxu0 0.0
    %1022 = vmatmul.mubr.f32.gmra.mrb[0].mxu0 %v955
    %v1023 = vpop.f32.mrb[0].mxu0
    %v1024 = vadd.f32 0.0, %v1023
    %v1025 = vpop.f32.mrb[0].mxu0
    %v1026 = vadd.f32 0.0, %v1025
    %1027 = vdwg.mxu0
    %v1030 = vcombine.low %v1024, %v1026
    %v1032 = vunpack.c.l.s4 1983009808
    %v1033 = vunpack.c.0.s8 %v1032
    %v1034 = vlaneseq
    %v1035 = vshrl.u32 %v1034, 7
    %v1036 = vsub.s32 %v1033, %v1035
    %v1037 = vrot.slane %v1030, %v1036
    %v1039 = vadd.f32 %v953, %v1037
    %v1040 = vxor.u32 %v1039, 2147483648
    %v1041 = vmul.f32 %v1040, 1.442695
    %v1042 = vpow.pop %v1041
    %v1043 = vadd.f32 %v1042, 1.0
    %v1044 = vrcp.pop %v1043
    %v1045 = vmul.f32 1.0, %v1044
    %1047 = vrot.lane.b32.xlu0 %v1039, 64
    %v1048 = vpop.permute.xlu0 %1047
    %v1049 = vrot.slane %v1048, 2
    %v1051 = vtanh.pop %v1049
    %v1052 = vmul.f32 %v1045, %v942
    %v1053 = vmul.f32 %v1045, %v1051
    %1055 = vrot.lane.b32.xlu0 %v1053, 64
    %v1056 = vpop.permute.xlu0 %1055
    %v1058 = vadd.f32 %v1052, %v1056
    %v1059 = vtanh.pop %v1058
    %v1061 = vrot.slane %v1045, 2
    %1064 = vrot.lane.b32.xlu0 %v1059, 64
    %v1065 = vpop.permute.xlu0 %1064
    %v1067 = vmul.f32 %v1061, %v1065
    %s1068 = scalar_lea.vmem [#allocation2], 28
    %v1069 = vld [vmem:[%s1068] sm:$0xf]
    %v1071 = vsel %vm257, %v1067, 0
    %1073 = vmatprep.subr.mxu0 %v241
    %1074 = vmatpush1.msra.mxu0 %v240
    %1075 = vmatprep.subr.mxu0 %v243
    %1076 = vmatpush1.msra.mxu0 %v242
    %1077 = vmatprep.subr.mxu0 %v245
    %1078 = vmatpush1.msra.mxu0 %v244
    %1079 = vmatprep.subr.mxu0 %v247
    %1080 = vmatpush1.msra.mxu0 %v246
    %1081 = vmatprep.subr.mxu0 %v249
    %1082 = vmatpush1.msra.mxu0 %v248
    %1083 = vmatprep.subr.mxu0 %v251
    %1084 = vmatpush1.msra.mxu0 %v250
    %1085 = vmatprep.subr.mxu0 %v253
    %1086 = vmatpush1.msra.mxu0 %v252
    %1087 = vmatprep.subr.mxu0 %v255
    %1088 = vmatpush1.msra.mxu0 %v254
    %1089 = vmatprep.subr.mxu0 0.0
    %1090 = vmatpush1.msra.mxu0 0.0
    %1091 = vmatprep.subr.mxu0 0.0
    %1092 = vmatpush1.msra.mxu0 0.0
    %1093 = vmatprep.subr.mxu0 0.0
    %1094 = vmatpush1.msra.mxu0 0.0
    %1095 = vmatprep.subr.mxu0 0.0
    %1096 = vmatpush1.msra.mxu0 0.0
    %1097 = vmatprep.subr.mxu0 0.0
    %1098 = vmatpush1.msra.mxu0 0.0
    %1099 = vmatprep.subr.mxu0 0.0
    %1100 = vmatpush1.msra.mxu0 0.0
    %1101 = vmatprep.subr.mxu0 0.0
    %1102 = vmatpush1.msra.mxu0 0.0
    %1103 = vmatprep.subr.mxu0 0.0
    %1104 = vmatpush1.msra.mxu0 0.0
    %1105 = vmatprep.subr.mxu0 0.0
    %1106 = vmatpush1.msra.mxu0 0.0
    %1107 = vmatprep.subr.mxu0 0.0
    %1108 = vmatpush1.msra.mxu0 0.0
    %1109 = vmatprep.subr.mxu0 0.0
    %1110 = vmatpush1.msra.mxu0 0.0
    %1111 = vmatprep.subr.mxu0 0.0
    %1112 = vmatpush1.msra.mxu0 0.0
    %1113 = vmatprep.subr.mxu0 0.0
    %1114 = vmatpush1.msra.mxu0 0.0
    %1115 = vmatprep.subr.mxu0 0.0
    %1116 = vmatpush1.msra.mxu0 0.0
    %1117 = vmatprep.subr.mxu0 0.0
    %1118 = vmatpush1.msra.mxu0 0.0
    %1119 = vmatprep.subr.mxu0 0.0
    %1120 = vmatpush1.msra.mxu0 0.0
    %1121 = vmatprep.subr.mxu0 0.0
    %1122 = vmatpush1.msra.mxu0 0.0
    %1123 = vmatprep.subr.mxu0 0.0
    %1124 = vmatpush1.msra.mxu0 0.0
    %1125 = vmatprep.subr.mxu0 0.0
    %1126 = vmatpush1.msra.mxu0 0.0
    %1127 = vmatprep.subr.mxu0 0.0
    %1128 = vmatpush1.msra.mxu0 0.0
    %1129 = vmatprep.subr.mxu0 0.0
    %1130 = vmatpush1.msra.mxu0 0.0
    %1131 = vmatprep.subr.mxu0 0.0
    %1132 = vmatpush1.msra.mxu0 0.0
    %1133 = vmatprep.subr.mxu0 0.0
    %1134 = vmatpush1.msra.mxu0 0.0
    %1135 = vmatprep.subr.mxu0 0.0
    %1136 = vmatpush1.msra.mxu0 0.0
    %1137 = vmatprep.mubr.f32.mxu0 0.0
    %1138 = vmatmul.mubr.f32.gmra.mrb[0].mxu0 %v1071
    %v1139 = vpop.f32.mrb[0].mxu0
    %v1140 = vadd.f32 0.0, %v1139
    %v1141 = vpop.f32.mrb[0].mxu0
    %v1142 = vadd.f32 0.0, %v1141
    %1143 = vdwg.mxu0
    %v1146 = vcombine.low %v1140, %v1142
    %v1148 = vunpack.c.l.s4 1983009808
    %v1149 = vunpack.c.0.s8 %v1148
    %v1150 = vlaneseq
    %v1151 = vshrl.u32 %v1150, 7
    %v1152 = vsub.s32 %v1149, %v1151
    %v1153 = vrot.slane %v1146, %v1152
    %v1155 = vadd.f32 %v1069, %v1153
    %v1156 = vxor.u32 %v1155, 2147483648
    %v1157 = vmul.f32 %v1156, 1.442695
    %v1158 = vpow.pop %v1157
    %v1159 = vadd.f32 %v1158, 1.0
    %v1160 = vrcp.pop %v1159
    %v1161 = vmul.f32 1.0, %v1160
    %1163 = vrot.lane.b32.xlu0 %v1155, 64
    %v1164 = vpop.permute.xlu0 %1163
    %v1165 = vrot.slane %v1164, 2
    %v1167 = vtanh.pop %v1165
    %v1168 = vmul.f32 %v1161, %v1058
    %v1169 = vmul.f32 %v1161, %v1167
    %1171 = vrot.lane.b32.xlu0 %v1169, 64
    %v1172 = vpop.permute.xlu0 %1171
    %v1174 = vadd.f32 %v1168, %v1172
    %v1175 = vtanh.pop %v1174
    %v1177 = vrot.slane %v1161, 2
    %1180 = vrot.lane.b32.xlu0 %v1175, 64
    %v1181 = vpop.permute.xlu0 %1180
    %v1183 = vmul.f32 %v1177, %v1181
    %v1184 = vld [vmem:[%s4] sm:$0xff]
    %v1185 = vld [vmem:[%s4 + $0x8] sm:$0xff]
    %v1186 = vld [vmem:[%s4 + $0x10] sm:$0xff]
    %v1187 = vld [vmem:[%s4 + $0x18] sm:$0xff]
    %v1188 = vld [vmem:[%s4 + $0x20] sm:$0xff]
    %v1189 = vld [vmem:[%s4 + $0x28] sm:$0xff]
    %v1190 = vld [vmem:[%s4 + $0x30] sm:$0xff]
    %v1191 = vld [vmem:[%s4 + $0x38] sm:$0xff]
    %v1192 = vld [vmem:[%s5] sm:$0x1]
    %v1194 = vlaneseq
    %v1195 = vshrl.u32 %v1194, 7
    %v1196 = vsub.s32 0, %v1195
    %v1197 = vrot.slane %v1192, %v1196
    %v1200 = vsel %vm257, %v1183, 0
    %1202 = vmatprep.subr.mxu0 0.0
    %1203 = vmatpush1.msra.mxu0 %v1184
    %1204 = vmatprep.subr.mxu0 0.0
    %1205 = vmatpush1.msra.mxu0 %v1185
    %1206 = vmatprep.subr.mxu0 0.0
    %1207 = vmatpush1.msra.mxu0 %v1186
    %1208 = vmatprep.subr.mxu0 0.0
    %1209 = vmatpush1.msra.mxu0 %v1187
    %1210 = vmatprep.subr.mxu0 0.0
    %1211 = vmatpush1.msra.mxu0 %v1188
    %1212 = vmatprep.subr.mxu0 0.0
    %1213 = vmatpush1.msra.mxu0 %v1189
    %1214 = vmatprep.subr.mxu0 0.0
    %1215 = vmatpush1.msra.mxu0 %v1190
    %1216 = vmatprep.subr.mxu0 0.0
    %1217 = vmatpush1.msra.mxu0 %v1191
    %1218 = vmatprep.subr.mxu0 0.0
    %1219 = vmatpush1.msra.mxu0 0.0
    %1220 = vmatprep.subr.mxu0 0.0
    %1221 = vmatpush1.msra.mxu0 0.0
    %1222 = vmatprep.subr.mxu0 0.0
    %1223 = vmatpush1.msra.mxu0 0.0
    %1224 = vmatprep.subr.mxu0 0.0
    %1225 = vmatpush1.msra.mxu0 0.0
    %1226 = vmatprep.subr.mxu0 0.0
    %1227 = vmatpush1.msra.mxu0 0.0
    %1228 = vmatprep.subr.mxu0 0.0
    %1229 = vmatpush1.msra.mxu0 0.0
    %1230 = vmatprep.subr.mxu0 0.0
    %1231 = vmatpush1.msra.mxu0 0.0
    %1232 = vmatprep.subr.mxu0 0.0
    %1233 = vmatpush1.msra.mxu0 0.0
    %1234 = vmatprep.subr.mxu0 0.0
    %1235 = vmatpush1.msra.mxu0 0.0
    %1236 = vmatprep.subr.mxu0 0.0
    %1237 = vmatpush1.msra.mxu0 0.0
    %1238 = vmatprep.subr.mxu0 0.0
    %1239 = vmatpush1.msra.mxu0 0.0
    %1240 = vmatprep.subr.mxu0 0.0
    %1241 = vmatpush1.msra.mxu0 0.0
    %1242 = vmatprep.subr.mxu0 0.0
    %1243 = vmatpush1.msra.mxu0 0.0
    %1244 = vmatprep.subr.mxu0 0.0
    %1245 = vmatpush1.msra.mxu0 0.0
    %1246 = vmatprep.subr.mxu0 0.0
    %1247 = vmatpush1.msra.mxu0 0.0
    %1248 = vmatprep.subr.mxu0 0.0
    %1249 = vmatpush1.msra.mxu0 0.0
    %1250 = vmatprep.subr.mxu0 0.0
    %1251 = vmatpush1.msra.mxu0 0.0
    %1252 = vmatprep.subr.mxu0 0.0
    %1253 = vmatpush1.msra.mxu0 0.0
    %1254 = vmatprep.subr.mxu0 0.0
    %1255 = vmatpush1.msra.mxu0 0.0
    %1256 = vmatprep.subr.mxu0 0.0
    %1257 = vmatpush1.msra.mxu0 0.0
    %1258 = vmatprep.subr.mxu0 0.0
    %1259 = vmatpush1.msra.mxu0 0.0
    %1260 = vmatprep.subr.mxu0 0.0
    %1261 = vmatpush1.msra.mxu0 0.0
    %1262 = vmatprep.subr.mxu0 0.0
    %1263 = vmatpush1.msra.mxu0 0.0
    %1264 = vmatprep.subr.mxu0 0.0
    %1265 = vmatpush1.msra.mxu0 0.0
    %1266 = vmatprep.mubr.f32.mxu0 0.0
    %1267 = vmatmul.mubr.f32.gmra.mrb[0].mxu0 %v1200
    %v1268 = vpop.f32.mrb[0].mxu0
    %v1269 = vadd.f32 %v1197, %v1268
    %v1270 = vpop.f32.mrb[0].mxu0
    %1271 = vdwg.mxu0
    %vm1272 = vcmask 25600
    %v1273 = vsel %vm1272, %v1269, -inf
    %1274 = vmax.xlane.f32.xlu0 %v1273
    %v1275 = vpop.xlane.xlu0 %1274
    %v1276 = vsub.f32 %v1269, %v1275
    %v1277 = vmul.f32 %v1276, 1.442695
    %v1278 = vpow.pop %v1277
    %v1279 = vsel %vm1272, %v1278, 0.0
    %1280 = vadd.xlane.f32.xlu0 %v1279
    %v1281 = vpop.xlane.xlu0 %1280
    %v1282 = vrcp.pop %v1281
    %v1283 = vmul.f32 %v1278, %v1282
    %1284 = vst.msk [vmem:[#allocation6] sm:$0x3] %vm1272, %v1283
    // Predicated region
    $region30: #{tpu_custom_call.1} parent=1 // pred_check
      _
    $region31: #{tpu_custom_call.1} parent=1 // pred_check_branch
      %1286 = sbr.rel (0) target = $region33
    $region32: #{tpu_custom_call.1} parent=1 // pred_region
      %s1288 = ssub.s32 32, 32
      %1289 = vsyncadd [#allocation5], %s1288
      %s1291 = sshll.u32 [#allocation6], 4
      %s1292 = int_to_ptr.vmem [resolvable:$true] %s1291
      %1294 = dma.vmem_to_hbm [thread:$0]  %s1292, 32, %s6, [#allocation5]
    $region33: #{tpu_custom_call.1} parent=1 // pred_fallthru
      _
    // Predicated region
    $region34: #{tpu_custom_call.1} parent=1 // pred_check
      _
    $region35: #{tpu_custom_call.1} parent=1 // pred_check_branch
      %1296 = sbr.rel (0) target = $region37
    $region36: #{tpu_custom_call.1} parent=1 // pred_region
      %1297 = dma.done [#allocation5], 32
    $region37: #{tpu_custom_call.1} parent=1 // pred_fallthru
      _
    %1298 = vsyncpa [#allocation4], 1
    %1299 = vsyncpa [#allocation5], 1

</llo_original>
